<compile_context>
chip_gen: v7x
topology: tpu7x:2x2x1
jax: 0.10.0
libtpu: 0.0.40
codegen_flags: <defaults>
</compile_context>

<pallas_src>
import jax
import jax.numpy as jnp
from jax.experimental import pallas as pl
from jax.experimental.pallas import tpu as pltpu

LANE = 128  # TPU lane width; also the bias slot stride inside bcat.


# ----------------------------- Pallas kernel -------------------------------

def res_fae_kernel(x_ref, w1f_ref, w2_ref, w3_ref, w4_ref, w5_ref, w6f_ref,
                   bcat_ref, b6f_ref, out_ref):
    f32, bf16 = jnp.float32, jnp.bfloat16

    def bias(slot):
        # each bias lives in its own 128-lane slot of bcat (vreg-aligned start)
        return bcat_ref[:, slot * LANE:(slot + 1) * LANE]           # (1, 128) f32

    x = x_ref[...]                                                  # (M, N_pad) bf16

    # encoder_fc1 with the forward DFT folded into the weight (bf16 MXU, f32 acc)
    h = jnp.dot(x, w1f_ref[...], preferred_element_type=f32)       # (M, 128)
    h = jnp.maximum(h + bias(0), 0.0)

    # interior layers: lane-dense (128,128) bf16 operands, f32 accumulation
    h = jnp.dot(h.astype(bf16), w2_ref[...], preferred_element_type=f32)
    h = jnp.maximum(h + bias(1), 0.0)
    h = jnp.dot(h.astype(bf16), w3_ref[...], preferred_element_type=f32)
    h = jnp.maximum(h + bias(2), 0.0)                               # latent (padded)
    h = jnp.dot(h.astype(bf16), w4_ref[...], preferred_element_type=f32)
    h = jnp.maximum(h + bias(3), 0.0)
    h = jnp.dot(h.astype(bf16), w5_ref[...], preferred_element_type=f32)
    h = jnp.maximum(h + bias(4), 0.0)                               # (M, 128)

    # decoder_fc3 with real(IFFT) folded into weight and bias (f32 out)
    out_ref[...] = (jnp.dot(h.astype(bf16), w6f_ref[...],
                            preferred_element_type=f32) + b6f_ref[...])


# ------------------------------ Host helpers --------------------------------

def _cdiv(a, b):
    return (a + b - 1) // b


def _round_up(x, m):
    return _cdiv(x, m) * m


def dft_matrices(N):
    """Real DFT / inverse-DFT matrices for a real signal of length N."""
    idx = jnp.arange(N, dtype=jnp.float32)
    ang = 2.0 * jnp.pi * jnp.outer(idx, idx) / N
    C, S = jnp.cos(ang), jnp.sin(ang)
    F = jnp.concatenate([C, -S], axis=1)            # (N, 2N): x @ F = [Re|Im] fft
    G = jnp.concatenate([C / N, -S / N], axis=0)    # (2N, N): [r|im] @ G = Re(ifft)
    return F, G


def linear_init(key, fan_in, fan_out):
    """Matches nn.Linear's U(-1/sqrt(fan_in), +1/sqrt(fan_in)); W stored (in,out)."""
    kw, kb = jax.random.split(key)
    bound = 1.0 / (fan_in ** 0.5)
    W = jax.random.uniform(kw, (fan_in, fan_out), jnp.float32, -bound, bound)
    b = jax.random.uniform(kb, (1, fan_out), jnp.float32, -bound, bound)
    return W, b


def make_params(key, n_features, window_size, latent_dim):
    N = n_features * window_size
    dims = [(2 * N, 128), (128, 64), (64, latent_dim),        # encoder
            (latent_dim, 64), (64, 128), (128, 2 * N)]        # decoder
    keys = jax.random.split(key, len(dims))
    params = []
    for k, (fi, fo) in zip(keys, dims):
        params.extend(linear_init(k, fi, fo))
    return tuple(params)                                      # (W1,b1,...,W6,b6)


def fold_params(params, n_features, window_size):
    """One-time prep: fold DFT/IDFT into the outer layers (f32), cast operands
    to bf16, lane-pad everything, pack the five small biases into one tile."""
    (W1, b1, W2, b2, W3, b3, W4, b4, W5, b5, W6, b6) = params
    N = n_features * window_size
    N_pad = _round_up(N, LANE)
    hi = jax.lax.Precision.HIGHEST
    bf16 = jnp.bfloat16

    F, G = dft_matrices(N)
    # Fold in f32 HIGHEST precision, cast the folded weights to bf16 afterwards.
    W1f = jnp.dot(F, W1, precision=hi)                        # (N, 128)  f32
    W6f = jnp.dot(W6, G, precision=hi)                        # (128, N)  f32
    b6f = jnp.dot(b6, G, precision=hi)                        # (1, N)    f32

    # lane-pad with zeros (results unchanged; loads/stores stay lane-dense)
    W1f = jnp.pad(W1f, ((0, N_pad - N), (0, 0))).astype(bf16)
    W6f = jnp.pad(W6f, ((0, 0), (0, N_pad - N))).astype(bf16)
    b6f = jnp.pad(b6f, ((0, 0), (0, N_pad - N))).astype(jnp.float32)

    # interior weights zero-padded to lane-dense (128, 128), bf16 operands
    assert max(W2.shape + W3.shape + W4.shape + W5.shape) <= LANE, \
        "interior/latent dims must be <= 128 for lane-dense padding"

    def pad_w(w):
        return jnp.pad(w, ((0, LANE - w.shape[0]),
                           (0, LANE - w.shape[1]))).astype(bf16)

    W2p, W3p, W4p, W5p = map(pad_w, (W2, W3, W4, W5))

    # pack the five small biases into one lane-aligned operand (slot stride 128)
    def pad_b(b):
        return jnp.pad(b, ((0, 0), (0, LANE - b.shape[1])))

    bcat = jnp.concatenate([pad_b(b) for b in (b1, b2, b3, b4, b5)],
                           axis=1).astype(jnp.float32)        # (1, 5*128)

    ops = (W1f, W2p, W3p, W4p, W5p, W6f, bcat, b6f)
    return ops, N, N_pad


def _tpu_caps():
    """(row_cap, vmem_limit_bytes) tuned per TPU generation."""
    kind = ""
    try:
        kind = jax.devices()[0].device_kind.lower()
    except Exception:
        pass
    if "v5" in kind:            # v5e: small scoped default, 4x128^2 MXU
        row_cap, vmem_limit = 128, 64 << 20
    elif "v7" in kind:          # v7x: 64 MiB physical VMEM per TensorCore
        row_cap, vmem_limit = 256, 48 << 20
    else:                       # v6e / unknown
        row_cap, vmem_limit = 256, 64 << 20
    try:                        # refine from the hardware query when available
        phys = int(pltpu.get_tpu_info().vmem_capacity_bytes)
        vmem_limit = min(vmem_limit, (phys * 3) // 4)
    except Exception:
        pass
    return row_cap, vmem_limit


def _choose_block_m(B, N_pad, weights_bytes, row_cap, vmem_limit):
    """Largest row tile that fits the VMEM budget, sized to divide B evenly and
    keep >= 2 grid steps (v7x megacore) when the batch allows."""
    # per-row VMEM: x tile (bf16, 2 buffers) + out tile (f32, 2 buffers)
    per_row = N_pad * (2 * 2 + 4 * 2)
    budget = int(vmem_limit * 0.75) - 2 * weights_bytes   # worst-case weight residency
    rows_fit = budget // per_row if budget > per_row * 8 else 8
    rows_fit = max(8, (rows_fit // 8) * 8)
    cap = max(8, min(row_cap, rows_fit))

    n_tiles = _cdiv(B, cap)
    if B >= 16:                  # give both v7x TensorCores at least one tile
        n_tiles = max(n_tiles, 2)
    return min(cap, _round_up(_cdiv(B, n_tiles), 8))


def residual_fae_forward(x, folded, n_features, window_size):
    """x: (B, window_size, n_features) f32 -> (B, window_size, n_features) f32."""
    ops, N, N_pad = folded
    B = x.shape[0]
    assert N == n_features * window_size

    # bf16 input halves input DMA bytes; padded feature lanes / batch rows are zero.
    x_flat = x.reshape(B, N).astype(jnp.bfloat16)

    row_cap, vmem_limit = _tpu_caps()
    weights_bytes = sum(int(o.nbytes) for o in ops)
    block_m = _choose_block_m(B, N_pad, weights_bytes, row_cap, vmem_limit)
    B_pad = _round_up(B, block_m)
    x_pad = jnp.pad(x_flat, ((0, B_pad - B), (0, N_pad - N)))

    operands = (x_pad,) + ops
    grid = (B_pad // block_m,)

    flops = 2 * B_pad * (2 * N_pad * 128 + 4 * 128 * 128)
    bytes_accessed = B_pad * N_pad * (2 + 4) + weights_bytes
    cost = pl.CostEstimate(flops=flops, transcendentals=0,
                           bytes_accessed=bytes_accessed)

    row_in_spec = pl.BlockSpec((block_m, N_pad), lambda i: (i, 0))
    row_out_spec = pl.BlockSpec((block_m, N_pad), lambda i: (i, 0))

    def build(fast):
        def const_spec(a):
            # grid-invariant index_map -> never re-DMA'd; single-buffer when allowed
            if fast:
                return pl.BlockSpec(a.shape, lambda i: (0,) * a.ndim,
                                    pipeline_mode=pl.Buffered(1))
            return pl.BlockSpec(a.shape, lambda i: (0,) * a.ndim)

        cp = dict(dimension_semantics=("parallel",),
                  vmem_limit_bytes=vmem_limit)
        if fast:
            # let XLA fuse the host-side reshape/cast/pad of x into the kernel input
            cp["allow_input_fusion"] = [True] + [False] * len(ops)

        return pl.pallas_call(
            res_fae_kernel,
            out_shape=jax.ShapeDtypeStruct((B_pad, N_pad), jnp.float32),
            grid=grid,
            in_specs=[row_in_spec] + [const_spec(o) for o in ops],
            out_specs=row_out_spec,
            compiler_params=pltpu.CompilerParams(**cp),
            cost_estimate=cost,
        )

    try:
        out_pad = build(fast=True)(*operands)
    except Exception:
        # Older jax without Buffered(1)/allow_input_fusion: plain double-buffered build.
        out_pad = build(fast=False)(*operands)

    return out_pad[:B, :N].reshape(B, window_size, n_features)


# ----------------------------- Pure-JAX reference ---------------------------

def ref_forward(x, params, n_features, window_size):
    (W1, b1, W2, b2, W3, b3, W4, b4, W5, b5, W6, b6) = params
    B = x.shape[0]
    N = n_features * window_size
    xf = x.reshape(B, N).astype(jnp.float32)
    xc = jnp.fft.fft(xf, axis=1)
    h = jnp.concatenate([xc.real, xc.imag], axis=1).astype(jnp.float32)
    h = jax.nn.relu(h @ W1 + b1)
    h = jax.nn.relu(h @ W2 + b2)
    z = jax.nn.relu(h @ W3 + b3)
    h = jax.nn.relu(z @ W4 + b4)
    h = jax.nn.relu(h @ W5 + b5)
    h = h @ W6 + b6
    r, im = h[:, :N], h[:, N:]
    y = jnp.fft.ifft(r + 1j * im, axis=1).real
    return y.reshape(B, window_size, n_features).astype(jnp.float32)


# ---------------------------------- Main -------------------------------------

if __name__ == "__main__":
    # Small shapes consistent with the module: batch=2, window_size=64, n_features=1
    batch, window_size, n_features, latent_dim = 2, 64, 1, 32

    key = jax.random.PRNGKey(0)
    k_params, k_x = jax.random.split(key)
    params = make_params(k_params, n_features, window_size, latent_dim)
    x = jax.random.normal(k_x, (batch, window_size, n_features), dtype=jnp.float32)

    folded = fold_params(params, n_features, window_size)
    out = residual_fae_forward(x, folded, n_features, window_size)
    out = jax.block_until_ready(out)

    ref = jax.block_until_ready(ref_forward(x, params, n_features, window_size))
    assert out.shape == (batch, window_size, n_features)
    assert jnp.allclose(out, ref, atol=1e-2, rtol=1e-2), "mismatch vs pure-JAX reference"

    print("KERNEL_OK")
</pallas_src>

<mosaic_0001>
module attributes {stable_mosaic.version = 11 : i64} {
  func.func @res_fae_kernel(%arg0: i32, %arg1: memref<8x128xbf16, #tpu.memory_space<vmem>>, %arg2: memref<128x128xbf16, #tpu.memory_space<vmem>>, %arg3: memref<128x128xbf16, #tpu.memory_space<vmem>>, %arg4: memref<128x128xbf16, #tpu.memory_space<vmem>>, %arg5: memref<128x128xbf16, #tpu.memory_space<vmem>>, %arg6: memref<128x128xbf16, #tpu.memory_space<vmem>>, %arg7: memref<128x128xbf16, #tpu.memory_space<vmem>>, %arg8: memref<1x640xf32, #tpu.memory_space<vmem>>, %arg9: memref<1x128xf32, #tpu.memory_space<vmem>>, %arg10: memref<8x128xf32, #tpu.memory_space<vmem>>) attributes {dimension_semantics = [#tpu.dimension_semantics<parallel>], iteration_bounds = array<i64: 1>, scalar_prefetch = 0 : i64, scratch_operands = 0 : i64, tpu.core_type = #tpu.core_type<tc>, window_params = [{transform_indices = @transform_0, window_bounds = array<i64: 8, 128>}, {pipeline_mode = #tpu.pipeline_mode<synchronous>, transform_indices = @transform_1, window_bounds = array<i64: 128, 128>}, {pipeline_mode = #tpu.pipeline_mode<synchronous>, transform_indices = @transform_2, window_bounds = array<i64: 128, 128>}, {pipeline_mode = #tpu.pipeline_mode<synchronous>, transform_indices = @transform_3, window_bounds = array<i64: 128, 128>}, {pipeline_mode = #tpu.pipeline_mode<synchronous>, transform_indices = @transform_4, window_bounds = array<i64: 128, 128>}, {pipeline_mode = #tpu.pipeline_mode<synchronous>, transform_indices = @transform_5, window_bounds = array<i64: 128, 128>}, {pipeline_mode = #tpu.pipeline_mode<synchronous>, transform_indices = @transform_6, window_bounds = array<i64: 128, 128>}, {pipeline_mode = #tpu.pipeline_mode<synchronous>, transform_indices = @transform_7, window_bounds = array<i64: 1, 640>}, {pipeline_mode = #tpu.pipeline_mode<synchronous>, transform_indices = @transform_8, window_bounds = array<i64: 1, 128>}, {transform_indices = @transform_9, window_bounds = array<i64: 8, 128>}]} {
    %c0 = arith.constant 0 : index
    %c0_0 = arith.constant 0 : index
    %0 = vector.load %arg1[%c0, %c0_0] : memref<8x128xbf16, #tpu.memory_space<vmem>>, vector<8x128xbf16>
    %c0_1 = arith.constant 0 : index
    %c0_2 = arith.constant 0 : index
    %1 = vector.load %arg2[%c0_1, %c0_2] : memref<128x128xbf16, #tpu.memory_space<vmem>>, vector<128x128xbf16>
    %cst = arith.constant dense<0.000000e+00> : vector<8x128xf32>
    %2 = tpu.matmul %0, %1, %cst {dimension_numbers = #tpu.dot_dimension_numbers<[1], [0], [0], [1], [0, 0, 1, 1], [], []>} : vector<8x128xbf16>, vector<128x128xbf16>, vector<8x128xf32> -> vector<8x128xf32>
    %c0_3 = arith.constant 0 : index
    %c0_4 = arith.constant 0 : index
    %3 = vector.load %arg8[%c0_3, %c0_4] : memref<1x640xf32, #tpu.memory_space<vmem>>, vector<1x128xf32>
    %4 = vector.broadcast %3 : vector<1x128xf32> to vector<8x128xf32>
    %5 = arith.addf %2, %4 : vector<8x128xf32>
    %cst_5 = arith.constant 0.000000e+00 : f32
    %6 = vector.broadcast %cst_5 : f32 to vector<8x128xf32>
    %7 = arith.maximumf %5, %6 : vector<8x128xf32>
    %8 = arith.truncf %7 : vector<8x128xf32> to vector<8x128xbf16>
    %c0_6 = arith.constant 0 : index
    %c0_7 = arith.constant 0 : index
    %9 = vector.load %arg3[%c0_6, %c0_7] : memref<128x128xbf16, #tpu.memory_space<vmem>>, vector<128x128xbf16>
    %cst_8 = arith.constant dense<0.000000e+00> : vector<8x128xf32>
    %10 = tpu.matmul %8, %9, %cst_8 {dimension_numbers = #tpu.dot_dimension_numbers<[1], [0], [0], [1], [0, 0, 1, 1], [], []>} : vector<8x128xbf16>, vector<128x128xbf16>, vector<8x128xf32> -> vector<8x128xf32>
    %c0_9 = arith.constant 0 : index
    %c128 = arith.constant 128 : index
    %11 = vector.load %arg8[%c0_9, %c128] : memref<1x640xf32, #tpu.memory_space<vmem>>, vector<1x128xf32>
    %12 = vector.broadcast %11 : vector<1x128xf32> to vector<8x128xf32>
    %13 = arith.addf %10, %12 : vector<8x128xf32>
    %cst_10 = arith.constant 0.000000e+00 : f32
    %14 = vector.broadcast %cst_10 : f32 to vector<8x128xf32>
    %15 = arith.maximumf %13, %14 : vector<8x128xf32>
    %16 = arith.truncf %15 : vector<8x128xf32> to vector<8x128xbf16>
    %c0_11 = arith.constant 0 : index
    %c0_12 = arith.constant 0 : index
    %17 = vector.load %arg4[%c0_11, %c0_12] : memref<128x128xbf16, #tpu.memory_space<vmem>>, vector<128x128xbf16>
    %cst_13 = arith.constant dense<0.000000e+00> : vector<8x128xf32>
    %18 = tpu.matmul %16, %17, %cst_13 {dimension_numbers = #tpu.dot_dimension_numbers<[1], [0], [0], [1], [0, 0, 1, 1], [], []>} : vector<8x128xbf16>, vector<128x128xbf16>, vector<8x128xf32> -> vector<8x128xf32>
    %c0_14 = arith.constant 0 : index
    %c256 = arith.constant 256 : index
    %19 = vector.load %arg8[%c0_14, %c256] : memref<1x640xf32, #tpu.memory_space<vmem>>, vector<1x128xf32>
    %20 = vector.broadcast %19 : vector<1x128xf32> to vector<8x128xf32>
    %21 = arith.addf %18, %20 : vector<8x128xf32>
    %cst_15 = arith.constant 0.000000e+00 : f32
    %22 = vector.broadcast %cst_15 : f32 to vector<8x128xf32>
    %23 = arith.maximumf %21, %22 : vector<8x128xf32>
    %24 = arith.truncf %23 : vector<8x128xf32> to vector<8x128xbf16>
    %c0_16 = arith.constant 0 : index
    %c0_17 = arith.constant 0 : index
    %25 = vector.load %arg5[%c0_16, %c0_17] : memref<128x128xbf16, #tpu.memory_space<vmem>>, vector<128x128xbf16>
    %cst_18 = arith.constant dense<0.000000e+00> : vector<8x128xf32>
    %26 = tpu.matmul %24, %25, %cst_18 {dimension_numbers = #tpu.dot_dimension_numbers<[1], [0], [0], [1], [0, 0, 1, 1], [], []>} : vector<8x128xbf16>, vector<128x128xbf16>, vector<8x128xf32> -> vector<8x128xf32>
    %c0_19 = arith.constant 0 : index
    %c384 = arith.constant 384 : index
    %27 = vector.load %arg8[%c0_19, %c384] : memref<1x640xf32, #tpu.memory_space<vmem>>, vector<1x128xf32>
    %28 = vector.broadcast %27 : vector<1x128xf32> to vector<8x128xf32>
    %29 = arith.addf %26, %28 : vector<8x128xf32>
    %cst_20 = arith.constant 0.000000e+00 : f32
    %30 = vector.broadcast %cst_20 : f32 to vector<8x128xf32>
    %31 = arith.maximumf %29, %30 : vector<8x128xf32>
    %32 = arith.truncf %31 : vector<8x128xf32> to vector<8x128xbf16>
    %c0_21 = arith.constant 0 : index
    %c0_22 = arith.constant 0 : index
    %33 = vector.load %arg6[%c0_21, %c0_22] : memref<128x128xbf16, #tpu.memory_space<vmem>>, vector<128x128xbf16>
    %cst_23 = arith.constant dense<0.000000e+00> : vector<8x128xf32>
    %34 = tpu.matmul %32, %33, %cst_23 {dimension_numbers = #tpu.dot_dimension_numbers<[1], [0], [0], [1], [0, 0, 1, 1], [], []>} : vector<8x128xbf16>, vector<128x128xbf16>, vector<8x128xf32> -> vector<8x128xf32>
    %c0_24 = arith.constant 0 : index
    %c512 = arith.constant 512 : index
    %35 = vector.load %arg8[%c0_24, %c512] : memref<1x640xf32, #tpu.memory_space<vmem>>, vector<1x128xf32>
    %36 = vector.broadcast %35 : vector<1x128xf32> to vector<8x128xf32>
    %37 = arith.addf %34, %36 : vector<8x128xf32>
    %cst_25 = arith.constant 0.000000e+00 : f32
    %38 = vector.broadcast %cst_25 : f32 to vector<8x128xf32>
    %39 = arith.maximumf %37, %38 : vector<8x128xf32>
    %40 = arith.truncf %39 : vector<8x128xf32> to vector<8x128xbf16>
    %c0_26 = arith.constant 0 : index
    %c0_27 = arith.constant 0 : index
    %41 = vector.load %arg7[%c0_26, %c0_27] : memref<128x128xbf16, #tpu.memory_space<vmem>>, vector<128x128xbf16>
    %cst_28 = arith.constant dense<0.000000e+00> : vector<8x128xf32>
    %42 = tpu.matmul %40, %41, %cst_28 {dimension_numbers = #tpu.dot_dimension_numbers<[1], [0], [0], [1], [0, 0, 1, 1], [], []>} : vector<8x128xbf16>, vector<128x128xbf16>, vector<8x128xf32> -> vector<8x128xf32>
    %c0_29 = arith.constant 0 : index
    %c0_30 = arith.constant 0 : index
    %43 = vector.load %arg9[%c0_29, %c0_30] : memref<1x128xf32, #tpu.memory_space<vmem>>, vector<1x128xf32>
    %44 = vector.broadcast %43 : vector<1x128xf32> to vector<8x128xf32>
    %45 = arith.addf %42, %44 : vector<8x128xf32>
    %c0_31 = arith.constant 0 : index
    %c0_32 = arith.constant 0 : index
    %46 = vector.load %arg10[%c0_31, %c0_32] : memref<8x128xf32, #tpu.memory_space<vmem>>, vector<8x128xf32>
    tpu.vector_store %arg10[%c0_31, %c0_32], %45 {strides = array<i32>} : memref<8x128xf32, #tpu.memory_space<vmem>>, vector<8x128xf32>,
    return
  }
  func.func @transform_0(%arg0: i32) -> (i32, i32) {
    %c0_i32 = arith.constant 0 : i32
    %c0_i32_0 = arith.constant 0 : i32
    return %arg0, %c0_i32 : i32, i32
  }
  func.func @transform_1(%arg0: i32) -> (i32, i32) {
    %c0_i32 = arith.constant 0 : i32
    %c0_i32_0 = arith.constant 0 : i32
    %c0_i32_1 = arith.constant 0 : i32
    return %c0_i32, %c0_i32_0 : i32, i32
  }
  func.func @transform_2(%arg0: i32) -> (i32, i32) {
    %c0_i32 = arith.constant 0 : i32
    %c0_i32_0 = arith.constant 0 : i32
    %c0_i32_1 = arith.constant 0 : i32
    return %c0_i32, %c0_i32_0 : i32, i32
  }
  func.func @transform_3(%arg0: i32) -> (i32, i32) {
    %c0_i32 = arith.constant 0 : i32
    %c0_i32_0 = arith.constant 0 : i32
    %c0_i32_1 = arith.constant 0 : i32
    return %c0_i32, %c0_i32_0 : i32, i32
  }
  func.func @transform_4(%arg0: i32) -> (i32, i32) {
    %c0_i32 = arith.constant 0 : i32
    %c0_i32_0 = arith.constant 0 : i32
    %c0_i32_1 = arith.constant 0 : i32
    return %c0_i32, %c0_i32_0 : i32, i32
  }
  func.func @transform_5(%arg0: i32) -> (i32, i32) {
    %c0_i32 = arith.constant 0 : i32
    %c0_i32_0 = arith.constant 0 : i32
    %c0_i32_1 = arith.constant 0 : i32
    return %c0_i32, %c0_i32_0 : i32, i32
  }
  func.func @transform_6(%arg0: i32) -> (i32, i32) {
    %c0_i32 = arith.constant 0 : i32
    %c0_i32_0 = arith.constant 0 : i32
    %c0_i32_1 = arith.constant 0 : i32
    return %c0_i32, %c0_i32_0 : i32, i32
  }
  func.func @transform_7(%arg0: i32) -> (i32, i32) {
    %c0_i32 = arith.constant 0 : i32
    %c0_i32_0 = arith.constant 0 : i32
    %c0_i32_1 = arith.constant 0 : i32
    return %c0_i32, %c0_i32_0 : i32, i32
  }
  func.func @transform_8(%arg0: i32) -> (i32, i32) {
    %c0_i32 = arith.constant 0 : i32
    %c0_i32_0 = arith.constant 0 : i32
    %c0_i32_1 = arith.constant 0 : i32
    return %c0_i32, %c0_i32_0 : i32, i32
  }
  func.func @transform_9(%arg0: i32) -> (i32, i32) {
    %c0_i32 = arith.constant 0 : i32
    %c0_i32_0 = arith.constant 0 : i32
    return %arg0, %c0_i32 : i32, i32
  }
}

module attributes {stable_mosaic.version = 11 : i64} {
  func.func @res_fae_kernel(%arg0: i32, %arg1: memref<8x128xbf16, #tpu.memory_space<vmem>>, %arg2: memref<128x128xbf16, #tpu.memory_space<vmem>>, %arg3: memref<128x128xbf16, #tpu.memory_space<vmem>>, %arg4: memref<128x128xbf16, #tpu.memory_space<vmem>>, %arg5: memref<128x128xbf16, #tpu.memory_space<vmem>>, %arg6: memref<128x128xbf16, #tpu.memory_space<vmem>>, %arg7: memref<128x128xbf16, #tpu.memory_space<vmem>>, %arg8: memref<1x640xf32, #tpu.memory_space<vmem>>, %arg9: memref<1x128xf32, #tpu.memory_space<vmem>>, %arg10: memref<8x128xf32, #tpu.memory_space<vmem>>) attributes {dimension_semantics = [#tpu.dimension_semantics<parallel>], iteration_bounds = array<i64: 1>, scalar_prefetch = 0 : i64, scratch_operands = 0 : i64, tpu.core_type = #tpu.core_type<tc>, window_params = [{transform_indices = @transform_0, window_bounds = array<i64: 8, 128>}, {pipeline_mode = #tpu.pipeline_mode<synchronous>, transform_indices = @transform_1, window_bounds = array<i64: 128, 128>}, {pipeline_mode = #tpu.pipeline_mode<synchronous>, transform_indices = @transform_2, window_bounds = array<i64: 128, 128>}, {pipeline_mode = #tpu.pipeline_mode<synchronous>, transform_indices = @transform_3, window_bounds = array<i64: 128, 128>}, {pipeline_mode = #tpu.pipeline_mode<synchronous>, transform_indices = @transform_4, window_bounds = array<i64: 128, 128>}, {pipeline_mode = #tpu.pipeline_mode<synchronous>, transform_indices = @transform_5, window_bounds = array<i64: 128, 128>}, {pipeline_mode = #tpu.pipeline_mode<synchronous>, transform_indices = @transform_6, window_bounds = array<i64: 128, 128>}, {pipeline_mode = #tpu.pipeline_mode<synchronous>, transform_indices = @transform_7, window_bounds = array<i64: 1, 640>}, {pipeline_mode = #tpu.pipeline_mode<synchronous>, transform_indices = @transform_8, window_bounds = array<i64: 1, 128>}, {transform_indices = @transform_9, window_bounds = array<i64: 8, 128>}]} {
    %c0 = arith.constant 0 : index
    %c0_0 = arith.constant 0 : index
    %0 = vector.load %arg1[%c0, %c0_0] : memref<8x128xbf16, #tpu.memory_space<vmem>>, vector<8x128xbf16>
    %c0_1 = arith.constant 0 : index
    %c0_2 = arith.constant 0 : index
    %1 = vector.load %arg2[%c0_1, %c0_2] : memref<128x128xbf16, #tpu.memory_space<vmem>>, vector<128x128xbf16>
    %cst = arith.constant dense<0.000000e+00> : vector<8x128xf32>
    %2 = tpu.matmul %0, %1, %cst {dimension_numbers = #tpu.dot_dimension_numbers<[1], [0], [0], [1], [0, 0, 1, 1], [], []>} : vector<8x128xbf16>, vector<128x128xbf16>, vector<8x128xf32> -> vector<8x128xf32>
    %c0_3 = arith.constant 0 : index
    %c0_4 = arith.constant 0 : index
    %3 = vector.load %arg8[%c0_3, %c0_4] : memref<1x640xf32, #tpu.memory_space<vmem>>, vector<1x128xf32>
    %4 = vector.broadcast %3 : vector<1x128xf32> to vector<8x128xf32>
    %5 = arith.addf %2, %4 : vector<8x128xf32>
    %cst_5 = arith.constant 0.000000e+00 : f32
    %6 = vector.broadcast %cst_5 : f32 to vector<8x128xf32>
    %7 = arith.maximumf %5, %6 : vector<8x128xf32>
    %8 = arith.truncf %7 : vector<8x128xf32> to vector<8x128xbf16>
    %c0_6 = arith.constant 0 : index
    %c0_7 = arith.constant 0 : index
    %9 = vector.load %arg3[%c0_6, %c0_7] : memref<128x128xbf16, #tpu.memory_space<vmem>>, vector<128x128xbf16>
    %cst_8 = arith.constant dense<0.000000e+00> : vector<8x128xf32>
    %10 = tpu.matmul %8, %9, %cst_8 {dimension_numbers = #tpu.dot_dimension_numbers<[1], [0], [0], [1], [0, 0, 1, 1], [], []>} : vector<8x128xbf16>, vector<128x128xbf16>, vector<8x128xf32> -> vector<8x128xf32>
    %c0_9 = arith.constant 0 : index
    %c128 = arith.constant 128 : index
    %11 = vector.load %arg8[%c0_9, %c128] : memref<1x640xf32, #tpu.memory_space<vmem>>, vector<1x128xf32>
    %12 = vector.broadcast %11 : vector<1x128xf32> to vector<8x128xf32>
    %13 = arith.addf %10, %12 : vector<8x128xf32>
    %cst_10 = arith.constant 0.000000e+00 : f32
    %14 = vector.broadcast %cst_10 : f32 to vector<8x128xf32>
    %15 = arith.maximumf %13, %14 : vector<8x128xf32>
    %16 = arith.truncf %15 : vector<8x128xf32> to vector<8x128xbf16>
    %c0_11 = arith.constant 0 : index
    %c0_12 = arith.constant 0 : index
    %17 = vector.load %arg4[%c0_11, %c0_12] : memref<128x128xbf16, #tpu.memory_space<vmem>>, vector<128x128xbf16>
    %cst_13 = arith.constant dense<0.000000e+00> : vector<8x128xf32>
    %18 = tpu.matmul %16, %17, %cst_13 {dimension_numbers = #tpu.dot_dimension_numbers<[1], [0], [0], [1], [0, 0, 1, 1], [], []>} : vector<8x128xbf16>, vector<128x128xbf16>, vector<8x128xf32> -> vector<8x128xf32>
    %c0_14 = arith.constant 0 : index
    %c256 = arith.constant 256 : index
    %19 = vector.load %arg8[%c0_14, %c256] : memref<1x640xf32, #tpu.memory_space<vmem>>, vector<1x128xf32>
    %20 = vector.broadcast %19 : vector<1x128xf32> to vector<8x128xf32>
    %21 = arith.addf %18, %20 : vector<8x128xf32>
    %cst_15 = arith.constant 0.000000e+00 : f32
    %22 = vector.broadcast %cst_15 : f32 to vector<8x128xf32>
    %23 = arith.maximumf %21, %22 : vector<8x128xf32>
    %24 = arith.truncf %23 : vector<8x128xf32> to vector<8x128xbf16>
    %c0_16 = arith.constant 0 : index
    %c0_17 = arith.constant 0 : index
    %25 = vector.load %arg5[%c0_16, %c0_17] : memref<128x128xbf16, #tpu.memory_space<vmem>>, vector<128x128xbf16>
    %cst_18 = arith.constant dense<0.000000e+00> : vector<8x128xf32>
    %26 = tpu.matmul %24, %25, %cst_18 {dimension_numbers = #tpu.dot_dimension_numbers<[1], [0], [0], [1], [0, 0, 1, 1], [], []>} : vector<8x128xbf16>, vector<128x128xbf16>, vector<8x128xf32> -> vector<8x128xf32>
    %c0_19 = arith.constant 0 : index
    %c384 = arith.constant 384 : index
    %27 = vector.load %arg8[%c0_19, %c384] : memref<1x640xf32, #tpu.memory_space<vmem>>, vector<1x128xf32>
    %28 = vector.broadcast %27 : vector<1x128xf32> to vector<8x128xf32>
    %29 = arith.addf %26, %28 : vector<8x128xf32>
    %cst_20 = arith.constant 0.000000e+00 : f32
    %30 = vector.broadcast %cst_20 : f32 to vector<8x128xf32>
    %31 = arith.maximumf %29, %30 : vector<8x128xf32>
    %32 = arith.truncf %31 : vector<8x128xf32> to vector<8x128xbf16>
    %c0_21 = arith.constant 0 : index
    %c0_22 = arith.constant 0 : index
    %33 = vector.load %arg6[%c0_21, %c0_22] : memref<128x128xbf16, #tpu.memory_space<vmem>>, vector<128x128xbf16>
    %cst_23 = arith.constant dense<0.000000e+00> : vector<8x128xf32>
    %34 = tpu.matmul %32, %33, %cst_23 {dimension_numbers = #tpu.dot_dimension_numbers<[1], [0], [0], [1], [0, 0, 1, 1], [], []>} : vector<8x128xbf16>, vector<128x128xbf16>, vector<8x128xf32> -> vector<8x128xf32>
    %c0_24 = arith.constant 0 : index
    %c512 = arith.constant 512 : index
    %35 = vector.load %arg8[%c0_24, %c512] : memref<1x640xf32, #tpu.memory_space<vmem>>, vector<1x128xf32>
    %36 = vector.broadcast %35 : vector<1x128xf32> to vector<8x128xf32>
    %37 = arith.addf %34, %36 : vector<8x128xf32>
    %cst_25 = arith.constant 0.000000e+00 : f32
    %38 = vector.broadcast %cst_25 : f32 to vector<8x128xf32>
    %39 = arith.maximumf %37, %38 : vector<8x128xf32>
    %40 = arith.truncf %39 : vector<8x128xf32> to vector<8x128xbf16>
    %c0_26 = arith.constant 0 : index
    %c0_27 = arith.constant 0 : index
    %41 = vector.load %arg7[%c0_26, %c0_27] : memref<128x128xbf16, #tpu.memory_space<vmem>>, vector<128x128xbf16>
    %cst_28 = arith.constant dense<0.000000e+00> : vector<8x128xf32>
    %42 = tpu.matmul %40, %41, %cst_28 {dimension_numbers = #tpu.dot_dimension_numbers<[1], [0], [0], [1], [0, 0, 1, 1], [], []>} : vector<8x128xbf16>, vector<128x128xbf16>, vector<8x128xf32> -> vector<8x128xf32>
    %c0_29 = arith.constant 0 : index
    %c0_30 = arith.constant 0 : index
    %43 = vector.load %arg9[%c0_29, %c0_30] : memref<1x128xf32, #tpu.memory_space<vmem>>, vector<1x128xf32>
    %44 = vector.broadcast %43 : vector<1x128xf32> to vector<8x128xf32>
    %45 = arith.addf %42, %44 : vector<8x128xf32>
    %c0_31 = arith.constant 0 : index
    %c0_32 = arith.constant 0 : index
    %46 = vector.load %arg10[%c0_31, %c0_32] : memref<8x128xf32, #tpu.memory_space<vmem>>, vector<8x128xf32>
    tpu.vector_store %arg10[%c0_31, %c0_32], %45 {strides = array<i32>} : memref<8x128xf32, #tpu.memory_space<vmem>>, vector<8x128xf32>,
    return
  }
  func.func @transform_0(%arg0: i32) -> (i32, i32) {
    %c0_i32 = arith.constant 0 : i32
    %c0_i32_0 = arith.constant 0 : i32
    return %arg0, %c0_i32 : i32, i32
  }
  func.func @transform_1(%arg0: i32) -> (i32, i32) {
    %c0_i32 = arith.constant 0 : i32
    %c0_i32_0 = arith.constant 0 : i32
    %c0_i32_1 = arith.constant 0 : i32
    return %c0_i32, %c0_i32_0 : i32, i32
  }
  func.func @transform_2(%arg0: i32) -> (i32, i32) {
    %c0_i32 = arith.constant 0 : i32
    %c0_i32_0 = arith.constant 0 : i32
    %c0_i32_1 = arith.constant 0 : i32
    return %c0_i32, %c0_i32_0 : i32, i32
  }
  func.func @transform_3(%arg0: i32) -> (i32, i32) {
    %c0_i32 = arith.constant 0 : i32
    %c0_i32_0 = arith.constant 0 : i32
    %c0_i32_1 = arith.constant 0 : i32
    return %c0_i32, %c0_i32_0 : i32, i32
  }
  func.func @transform_4(%arg0: i32) -> (i32, i32) {
    %c0_i32 = arith.constant 0 : i32
    %c0_i32_0 = arith.constant 0 : i32
    %c0_i32_1 = arith.constant 0 : i32
    return %c0_i32, %c0_i32_0 : i32, i32
  }
  func.func @transform_5(%arg0: i32) -> (i32, i32) {
    %c0_i32 = arith.constant 0 : i32
    %c0_i32_0 = arith.constant 0 : i32
    %c0_i32_1 = arith.constant 0 : i32
    return %c0_i32, %c0_i32_0 : i32, i32
  }
  func.func @transform_6(%arg0: i32) -> (i32, i32) {
    %c0_i32 = arith.constant 0 : i32
    %c0_i32_0 = arith.constant 0 : i32
    %c0_i32_1 = arith.constant 0 : i32
    return %c0_i32, %c0_i32_0 : i32, i32
  }
  func.func @transform_7(%arg0: i32) -> (i32, i32) {
    %c0_i32 = arith.constant 0 : i32
    %c0_i32_0 = arith.constant 0 : i32
    %c0_i32_1 = arith.constant 0 : i32
    return %c0_i32, %c0_i32_0 : i32, i32
  }
  func.func @transform_8(%arg0: i32) -> (i32, i32) {
    %c0_i32 = arith.constant 0 : i32
    %c0_i32_0 = arith.constant 0 : i32
    %c0_i32_1 = arith.constant 0 : i32
    return %c0_i32, %c0_i32_0 : i32, i32
  }
  func.func @transform_9(%arg0: i32) -> (i32, i32) {
    %c0_i32 = arith.constant 0 : i32
    %c0_i32_0 = arith.constant 0 : i32
    return %arg0, %c0_i32 : i32, i32
  }
}

</mosaic_0001>

<llo_original>
// kernel: tpu_custom_call.1
$region0: #{tpu_custom_call.1}
  #allocation0 [shape = 'u32[]', space=smem, size = 0x4, offset = 0x4, fixed_abs, tag = 'smem constant byte address 0x4 - core index']
  #allocation1 [shape = 'u32[144,128]{1,0:T(1,128)}', space=vmem, size = 0x12000, scoped, tag = 'internal scratch']
  %s0 = inlined_call_operand.hbm [shape: bf16[8,128], index: 0, kind: input, shape index: {}]
  %s1 = inlined_call_operand.hbm [shape: bf16[128,128], index: 1, kind: input, shape index: {}]
  %s2 = inlined_call_operand.hbm [shape: bf16[128,128], index: 2, kind: input, shape index: {}]
  %s3 = inlined_call_operand.hbm [shape: bf16[128,128], index: 3, kind: input, shape index: {}]
  %s4 = inlined_call_operand.hbm [shape: bf16[128,128], index: 4, kind: input, shape index: {}]
  %s5 = inlined_call_operand.hbm [shape: bf16[128,128], index: 5, kind: input, shape index: {}]
  %s6 = inlined_call_operand.hbm [shape: bf16[128,128], index: 6, kind: input, shape index: {}]
  %s7 = inlined_call_operand.hbm [shape: f32[1,640], index: 7, kind: input, shape index: {}]
  %s8 = inlined_call_operand.hbm [shape: f32[1,128], index: 8, kind: input, shape index: {}]
  %s9 = inlined_call_operand.hbm [shape: f32[8,128], index: 9, kind: output, shape index: {}]
  %s10 = sld [smem:[#allocation0]]
  $region82: #{tpu_custom_call.1} parent=0
    _
  %s12 = ssub.s32 1, %s10
  %s13 = scalar_select 0, %s12, %s10
  $region1: #{tpu_custom_call.1} parent=0
    #allocation2 [shape = 'u8[2048]{0}', space=vmem, size = 0x800, scoped, tag = 'input window, operand 0, single buffered']
    #allocation3 [shape = 's32[1]{0}', space=sflag, size = 0x4, scoped, tag = 'scoped memory for tpu_custom_call.1']
    #allocation4 [shape = 's32[1]{0}', space=sflag, size = 0x4, scoped, tag = 'scoped memory for tpu_custom_call.1']
    #allocation5 [shape = 'u8[32768]{0}', space=vmem, size = 0x8000, scoped, tag = 'input window, operand 1, single buffered']
    #allocation6 [shape = 's32[1]{0}', space=sflag, size = 0x4, scoped, tag = 'scoped memory for tpu_custom_call.1']
    #allocation7 [shape = 'u8[32768]{0}', space=vmem, size = 0x8000, scoped, tag = 'input window, operand 2, single buffered']
    #allocation8 [shape = 'u8[32768]{0}', space=vmem, size = 0x8000, scoped, tag = 'input window, operand 3, single buffered']
    #allocation9 [shape = 's32[1]{0}', space=sflag, size = 0x4, scoped, tag = 'scoped memory for tpu_custom_call.1']
    #allocation10 [shape = 'u8[32768]{0}', space=vmem, size = 0x8000, scoped, tag = 'input window, operand 4, single buffered']
    #allocation11 [shape = 'u8[32768]{0}', space=vmem, size = 0x8000, scoped, tag = 'input window, operand 5, single buffered']
    #allocation12 [shape = 's32[1]{0}', space=sflag, size = 0x4, scoped, tag = 'scoped memory for tpu_custom_call.1']
    #allocation13 [shape = 'u8[32768]{0}', space=vmem, size = 0x8000, scoped, tag = 'input window, operand 6, single buffered']
    #allocation14 [shape = 'u8[2560]{0}', space=vmem, size = 0xc00, scoped, tag = 'input window, operand 7, single buffered']
    #allocation15 [shape = 's32[1]{0}', space=sflag, size = 0x4, scoped, tag = 'scoped memory for tpu_custom_call.1']
    #allocation16 [shape = 'u8[512]{0}', space=vmem, size = 0x400, scoped, tag = 'input window, operand 8, single buffered']
    #allocation17 [shape = 'u8[4096]{0}', space=vmem, size = 0x1000, scoped, tag = 'output window, operand 0, single buffered']
    %14 = vsyncpa [#allocation3], 0
    %15 = vsyncpa [#allocation6], 0
    %16 = vsyncpa [#allocation9], 0
    %17 = vsyncpa [#allocation12], 0
    %18 = vsyncpa [#allocation15], 0
    %19 = vsyncpa [#allocation4], 0
    // Predicated region
    $region2: #{tpu_custom_call.1} parent=1 // pred_check
      _
    $region3: #{tpu_custom_call.1} parent=1 // pred_check_branch
      %21 = sbr.rel (0) target = $region5
    $region4: #{tpu_custom_call.1} parent=1 // pred_region
      %s23 = ssub.s32 64, 64
      %24 = vsyncadd [#allocation3], %s23
      %s26 = sshll.u32 [#allocation2], 4
      %s27 = int_to_ptr.vmem [resolvable:$true] %s26
      %29 = dma.hbm_to_vmem [thread:$0]  %s0, 64, %s27, [#allocation3]
    $region5: #{tpu_custom_call.1} parent=1 // pred_fallthru
      _
    // Predicated region
    $region6: #{tpu_custom_call.1} parent=1 // pred_check
      _
    $region7: #{tpu_custom_call.1} parent=1 // pred_check_branch
      %31 = sbr.rel (0) target = $region9
    $region8: #{tpu_custom_call.1} parent=1 // pred_region
      %s33 = ssub.s32 1024, 1024
      %34 = vsyncadd [#allocation6], %s33
      %s35 = sshll.u32 [#allocation5], 4
      %s36 = int_to_ptr.vmem [resolvable:$true] %s35
      %41 = dma.hbm_to_vmem [thread:$0]  %s1, 1024, %s36, [#allocation6], 64, 64, 4
    $region9: #{tpu_custom_call.1} parent=1 // pred_fallthru
      _
    // Predicated region
    $region10: #{tpu_custom_call.1} parent=1 // pred_check
      _
    $region11: #{tpu_custom_call.1} parent=1 // pred_check_branch
      %43 = sbr.rel (0) target = $region13
    $region12: #{tpu_custom_call.1} parent=1 // pred_region
      %s45 = ssub.s32 1024, 1024
      %46 = vsyncadd [#allocation6], %s45
      %s47 = sshll.u32 [#allocation7], 4
      %s48 = int_to_ptr.vmem [resolvable:$true] %s47
      %53 = dma.hbm_to_vmem [thread:$0]  %s2, 1024, %s48, [#allocation6], 64, 64, 4
    $region13: #{tpu_custom_call.1} parent=1 // pred_fallthru
      _
    // Predicated region
    $region14: #{tpu_custom_call.1} parent=1 // pred_check
      _
    $region15: #{tpu_custom_call.1} parent=1 // pred_check_branch
      %55 = sbr.rel (0) target = $region17
    $region16: #{tpu_custom_call.1} parent=1 // pred_region
      %s57 = ssub.s32 1024, 1024
      %58 = vsyncadd [#allocation9], %s57
      %s59 = sshll.u32 [#allocation8], 4
      %s60 = int_to_ptr.vmem [resolvable:$true] %s59
      %65 = dma.hbm_to_vmem [thread:$0]  %s3, 1024, %s60, [#allocation9], 64, 64, 4
    $region17: #{tpu_custom_call.1} parent=1 // pred_fallthru
      _
    // Predicated region
    $region18: #{tpu_custom_call.1} parent=1 // pred_check
      _
    $region19: #{tpu_custom_call.1} parent=1 // pred_check_branch
      %67 = sbr.rel (0) target = $region21
    $region20: #{tpu_custom_call.1} parent=1 // pred_region
      %s69 = ssub.s32 1024, 1024
      %70 = vsyncadd [#allocation9], %s69
      %s71 = sshll.u32 [#allocation10], 4
      %s72 = int_to_ptr.vmem [resolvable:$true] %s71
      %77 = dma.hbm_to_vmem [thread:$0]  %s4, 1024, %s72, [#allocation9], 64, 64, 4
    $region21: #{tpu_custom_call.1} parent=1 // pred_fallthru
      _
    // Predicated region
    $region22: #{tpu_custom_call.1} parent=1 // pred_check
      _
    $region23: #{tpu_custom_call.1} parent=1 // pred_check_branch
      %79 = sbr.rel (0) target = $region25
    $region24: #{tpu_custom_call.1} parent=1 // pred_region
      %s81 = ssub.s32 1024, 1024
      %82 = vsyncadd [#allocation12], %s81
      %s83 = sshll.u32 [#allocation11], 4
      %s84 = int_to_ptr.vmem [resolvable:$true] %s83
      %89 = dma.hbm_to_vmem [thread:$0]  %s5, 1024, %s84, [#allocation12], 64, 64, 4
    $region25: #{tpu_custom_call.1} parent=1 // pred_fallthru
      _
    // Predicated region
    $region26: #{tpu_custom_call.1} parent=1 // pred_check
      _
    $region27: #{tpu_custom_call.1} parent=1 // pred_check_branch
      %91 = sbr.rel (0) target = $region29
    $region28: #{tpu_custom_call.1} parent=1 // pred_region
      %s93 = ssub.s32 1024, 1024
      %94 = vsyncadd [#allocation12], %s93
      %s95 = sshll.u32 [#allocation13], 4
      %s96 = int_to_ptr.vmem [resolvable:$true] %s95
      %101 = dma.hbm_to_vmem [thread:$0]  %s6, 1024, %s96, [#allocation12], 64, 64, 4
    $region29: #{tpu_custom_call.1} parent=1 // pred_fallthru
      _
    // Predicated region
    $region30: #{tpu_custom_call.1} parent=1 // pred_check
      _
    $region31: #{tpu_custom_call.1} parent=1 // pred_check_branch
      %103 = sbr.rel (0) target = $region33
    $region32: #{tpu_custom_call.1} parent=1 // pred_region
      %s105 = ssub.s32 80, 80
      %106 = vsyncadd [#allocation15], %s105
      %s108 = sshll.u32 [#allocation14], 4
      %s109 = int_to_ptr.vmem [resolvable:$true] %s108
      %111 = dma.hbm_to_vmem [thread:$0]  %s7, 80, %s109, [#allocation15]
    $region33: #{tpu_custom_call.1} parent=1 // pred_fallthru
      _
    // Predicated region
    $region34: #{tpu_custom_call.1} parent=1 // pred_check
      _
    $region35: #{tpu_custom_call.1} parent=1 // pred_check_branch
      %113 = sbr.rel (0) target = $region37
    $region36: #{tpu_custom_call.1} parent=1 // pred_region
      %s115 = ssub.s32 16, 16
      %116 = vsyncadd [#allocation15], %s115
      %s118 = sshll.u32 [#allocation16], 4
      %s119 = int_to_ptr.vmem [resolvable:$true] %s118
      %121 = dma.hbm_to_vmem [thread:$0]  %s8, 16, %s119, [#allocation15]
    $region37: #{tpu_custom_call.1} parent=1 // pred_fallthru
      _
    // Predicated region
    $region38: #{tpu_custom_call.1} parent=1 // pred_check
      _
    $region39: #{tpu_custom_call.1} parent=1 // pred_check_branch
      %123 = sbr.rel (0) target = $region41
    $region40: #{tpu_custom_call.1} parent=1 // pred_region
      %124 = dma.done [#allocation3], 64
    $region41: #{tpu_custom_call.1} parent=1 // pred_fallthru
      _
    // Predicated region
    $region42: #{tpu_custom_call.1} parent=1 // pred_check
      _
    $region43: #{tpu_custom_call.1} parent=1 // pred_check_branch
      %126 = sbr.rel (0) target = $region45
    $region44: #{tpu_custom_call.1} parent=1 // pred_region
      %127 = dma.done [#allocation6], 1024
    $region45: #{tpu_custom_call.1} parent=1 // pred_fallthru
      _
    // Predicated region
    $region46: #{tpu_custom_call.1} parent=1 // pred_check
      _
    $region47: #{tpu_custom_call.1} parent=1 // pred_check_branch
      %129 = sbr.rel (0) target = $region49
    $region48: #{tpu_custom_call.1} parent=1 // pred_region
      %130 = dma.done [#allocation6], 1024
    $region49: #{tpu_custom_call.1} parent=1 // pred_fallthru
      _
    // Predicated region
    $region50: #{tpu_custom_call.1} parent=1 // pred_check
      _
    $region51: #{tpu_custom_call.1} parent=1 // pred_check_branch
      %132 = sbr.rel (0) target = $region53
    $region52: #{tpu_custom_call.1} parent=1 // pred_region
      %133 = dma.done [#allocation9], 1024
    $region53: #{tpu_custom_call.1} parent=1 // pred_fallthru
      _
    // Predicated region
    $region54: #{tpu_custom_call.1} parent=1 // pred_check
      _
    $region55: #{tpu_custom_call.1} parent=1 // pred_check_branch
      %135 = sbr.rel (0) target = $region57
    $region56: #{tpu_custom_call.1} parent=1 // pred_region
      %136 = dma.done [#allocation9], 1024
    $region57: #{tpu_custom_call.1} parent=1 // pred_fallthru
      _
    // Predicated region
    $region58: #{tpu_custom_call.1} parent=1 // pred_check
      _
    $region59: #{tpu_custom_call.1} parent=1 // pred_check_branch
      %138 = sbr.rel (0) target = $region61
    $region60: #{tpu_custom_call.1} parent=1 // pred_region
      %139 = dma.done [#allocation12], 1024
    $region61: #{tpu_custom_call.1} parent=1 // pred_fallthru
      _
    // Predicated region
    $region62: #{tpu_custom_call.1} parent=1 // pred_check
      _
    $region63: #{tpu_custom_call.1} parent=1 // pred_check_branch
      %141 = sbr.rel (0) target = $region65
    $region64: #{tpu_custom_call.1} parent=1 // pred_region
      %142 = dma.done [#allocation12], 1024
    $region65: #{tpu_custom_call.1} parent=1 // pred_fallthru
      _
    // Predicated region
    $region66: #{tpu_custom_call.1} parent=1 // pred_check
      _
    $region67: #{tpu_custom_call.1} parent=1 // pred_check_branch
      %144 = sbr.rel (0) target = $region69
    $region68: #{tpu_custom_call.1} parent=1 // pred_region
      %145 = dma.done [#allocation15], 80
    $region69: #{tpu_custom_call.1} parent=1 // pred_fallthru
      _
    // Predicated region
    $region70: #{tpu_custom_call.1} parent=1 // pred_check
      _
    $region71: #{tpu_custom_call.1} parent=1 // pred_check_branch
      %147 = sbr.rel (0) target = $region73
    $region72: #{tpu_custom_call.1} parent=1 // pred_region
      %148 = dma.done [#allocation15], 16
    $region73: #{tpu_custom_call.1} parent=1 // pred_fallthru
      _
    %v150 = vld [vmem:[#allocation2] sm:$0xf]
    %v151 = vld [vmem:[#allocation5] sm:$0xf]
    %v152 = vld [vmem:[#allocation5 + $0x4] sm:$0xf]
    %v153 = vld [vmem:[#allocation5 + $0x8] sm:$0xf]
    %v154 = vld [vmem:[#allocation5 + $0xc] sm:$0xf]
    %v155 = vld [vmem:[#allocation5 + $0x10] sm:$0xf]
    %v156 = vld [vmem:[#allocation5 + $0x14] sm:$0xf]
    %v157 = vld [vmem:[#allocation5 + $0x18] sm:$0xf]
    %v158 = vld [vmem:[#allocation5 + $0x1c] sm:$0xf]
    %v159 = vld [vmem:[#allocation5 + $0x20] sm:$0xf]
    %v160 = vld [vmem:[#allocation5 + $0x24] sm:$0xf]
    %v161 = vld [vmem:[#allocation5 + $0x28] sm:$0xf]
    %v162 = vld [vmem:[#allocation5 + $0x2c] sm:$0xf]
    %v163 = vld [vmem:[#allocation5 + $0x30] sm:$0xf]
    %v164 = vld [vmem:[#allocation5 + $0x34] sm:$0xf]
    %v165 = vld [vmem:[#allocation5 + $0x38] sm:$0xf]
    %v166 = vld [vmem:[#allocation5 + $0x3c] sm:$0xf]
    %v167 = vld [vmem:[#allocation14] sm:$0x1]
    %v169 = vlaneseq
    %v170 = vshrl.u32 %v169, 7
    %v171 = vsub.s32 0, %v170
    %v172 = vrot.slane %v167, %v171
    %v190 = vunpack.c.l.b16 %v151
    %v191 = vunpack.c.l.b16 %v152
    %v192 = vunpack.c.l.b16 %v153
    %v193 = vunpack.c.l.b16 %v154
    %v194 = vunpack.c.l.b16 %v155
    %v195 = vunpack.c.l.b16 %v156
    %v196 = vunpack.c.l.b16 %v157
    %v197 = vunpack.c.l.b16 %v158
    %v198 = vunpack.c.l.b16 %v159
    %v199 = vunpack.c.l.b16 %v160
    %v200 = vunpack.c.l.b16 %v161
    %v201 = vunpack.c.l.b16 %v162
    %v202 = vunpack.c.l.b16 %v163
    %v203 = vunpack.c.l.b16 %v164
    %v204 = vunpack.c.l.b16 %v165
    %v205 = vunpack.c.l.b16 %v166
    %v206 = vpack.c.b16 %v191, %v190
    %v207 = vpack.c.b16 %v193, %v192
    %v208 = vpack.c.b16 %v195, %v194
    %v209 = vpack.c.b16 %v197, %v196
    %v210 = vpack.c.b16 %v199, %v198
    %v211 = vpack.c.b16 %v201, %v200
    %v212 = vpack.c.b16 %v203, %v202
    %v213 = vpack.c.b16 %v205, %v204
    %222 = vmatprep.subr.bf16.mxu0 0
    %223 = vmatpush1.bf16.msra.mxu0 %v206
    %224 = vmatprep.subr.bf16.mxu0 0
    %225 = vmatpush1.bf16.msra.mxu0 %v207
    %226 = vmatprep.subr.bf16.mxu0 0
    %227 = vmatpush1.bf16.msra.mxu0 %v208
    %228 = vmatprep.subr.bf16.mxu0 0
    %229 = vmatpush1.bf16.msra.mxu0 %v209
    %230 = vmatprep.subr.bf16.mxu0 0
    %231 = vmatpush1.bf16.msra.mxu0 %v210
    %232 = vmatprep.subr.bf16.mxu0 0
    %233 = vmatpush1.bf16.msra.mxu0 %v211
    %234 = vmatprep.subr.bf16.mxu0 0
    %235 = vmatpush1.bf16.msra.mxu0 %v212
    %236 = vmatprep.subr.bf16.mxu0 0
    %237 = vmatpush1.bf16.msra.mxu0 %v213
    %238 = vmatprep.subr.bf16.mxu0 0
    %239 = vmatpush1.bf16.msra.mxu0 0
    %240 = vmatprep.subr.bf16.mxu0 0
    %241 = vmatpush1.bf16.msra.mxu0 0
    %242 = vmatprep.subr.bf16.mxu0 0
    %243 = vmatpush1.bf16.msra.mxu0 0
    %244 = vmatprep.subr.bf16.mxu0 0
    %245 = vmatpush1.bf16.msra.mxu0 0
    %246 = vmatprep.subr.bf16.mxu0 0
    %247 = vmatpush1.bf16.msra.mxu0 0
    %248 = vmatprep.subr.bf16.mxu0 0
    %249 = vmatpush1.bf16.msra.mxu0 0
    %250 = vmatprep.subr.bf16.mxu0 0
    %251 = vmatpush1.bf16.msra.mxu0 0
    %252 = vmatprep.subr.bf16.mxu0 0
    %253 = vmatpush1.bf16.msra.mxu0 0
    %254 = vmatprep.mubr.bf16.mxu0 0
    %255 = vmatmul.mubr.bf16.gmra.mrb[0].mxu0 %v150
    %v256 = vpop.f32.mrb[0].mxu0
    %v257 = vadd.f32 %v172, %v256
    %v258 = vpop.f32.mrb[0].mxu0
    %v259 = vpop.f32.mrb[0].mxu0
    %v260 = vpop.f32.mrb[0].mxu0
    %261 = vdwg.mxu0
    %v262 = vmax.f32 %v257, 0.0
    %v263 = vpack.c.bf16 %v262, %v262
    %v264 = vld [vmem:[#allocation7] sm:$0xf]
    %v265 = vld [vmem:[#allocation7 + $0x4] sm:$0xf]
    %v266 = vld [vmem:[#allocation7 + $0x8] sm:$0xf]
    %v267 = vld [vmem:[#allocation7 + $0xc] sm:$0xf]
    %v268 = vld [vmem:[#allocation7 + $0x10] sm:$0xf]
    %v269 = vld [vmem:[#allocation7 + $0x14] sm:$0xf]
    %v270 = vld [vmem:[#allocation7 + $0x18] sm:$0xf]
    %v271 = vld [vmem:[#allocation7 + $0x1c] sm:$0xf]
    %v272 = vld [vmem:[#allocation7 + $0x20] sm:$0xf]
    %v273 = vld [vmem:[#allocation7 + $0x24] sm:$0xf]
    %v274 = vld [vmem:[#allocation7 + $0x28] sm:$0xf]
    %v275 = vld [vmem:[#allocation7 + $0x2c] sm:$0xf]
    %v276 = vld [vmem:[#allocation7 + $0x30] sm:$0xf]
    %v277 = vld [vmem:[#allocation7 + $0x34] sm:$0xf]
    %v278 = vld [vmem:[#allocation7 + $0x38] sm:$0xf]
    %v279 = vld [vmem:[#allocation7 + $0x3c] sm:$0xf]
    %v280 = vld [vmem:[#allocation14 + $0x1] sm:$0x1]
    %v282 = vlaneseq
    %v283 = vshrl.u32 %v282, 7
    %v284 = vsub.s32 0, %v283
    %v285 = vrot.slane %v280, %v284
    %v303 = vunpack.c.l.b16 %v264
    %v304 = vunpack.c.l.b16 %v265
    %v305 = vunpack.c.l.b16 %v266
    %v306 = vunpack.c.l.b16 %v267
    %v307 = vunpack.c.l.b16 %v268
    %v308 = vunpack.c.l.b16 %v269
    %v309 = vunpack.c.l.b16 %v270
    %v310 = vunpack.c.l.b16 %v271
    %v311 = vunpack.c.l.b16 %v272
    %v312 = vunpack.c.l.b16 %v273
    %v313 = vunpack.c.l.b16 %v274
    %v314 = vunpack.c.l.b16 %v275
    %v315 = vunpack.c.l.b16 %v276
    %v316 = vunpack.c.l.b16 %v277
    %v317 = vunpack.c.l.b16 %v278
    %v318 = vunpack.c.l.b16 %v279
    %v319 = vpack.c.b16 %v304, %v303
    %v320 = vpack.c.b16 %v306, %v305
    %v321 = vpack.c.b16 %v308, %v307
    %v322 = vpack.c.b16 %v310, %v309
    %v323 = vpack.c.b16 %v312, %v311
    %v324 = vpack.c.b16 %v314, %v313
    %v325 = vpack.c.b16 %v316, %v315
    %v326 = vpack.c.b16 %v318, %v317
    %335 = vmatprep.subr.bf16.mxu0 0
    %336 = vmatpush1.bf16.msra.mxu0 %v319
    %337 = vmatprep.subr.bf16.mxu0 0
    %338 = vmatpush1.bf16.msra.mxu0 %v320
    %339 = vmatprep.subr.bf16.mxu0 0
    %340 = vmatpush1.bf16.msra.mxu0 %v321
    %341 = vmatprep.subr.bf16.mxu0 0
    %342 = vmatpush1.bf16.msra.mxu0 %v322
    %343 = vmatprep.subr.bf16.mxu0 0
    %344 = vmatpush1.bf16.msra.mxu0 %v323
    %345 = vmatprep.subr.bf16.mxu0 0
    %346 = vmatpush1.bf16.msra.mxu0 %v324
    %347 = vmatprep.subr.bf16.mxu0 0
    %348 = vmatpush1.bf16.msra.mxu0 %v325
    %349 = vmatprep.subr.bf16.mxu0 0
    %350 = vmatpush1.bf16.msra.mxu0 %v326
    %351 = vmatprep.subr.bf16.mxu0 0
    %352 = vmatpush1.bf16.msra.mxu0 0
    %353 = vmatprep.subr.bf16.mxu0 0
    %354 = vmatpush1.bf16.msra.mxu0 0
    %355 = vmatprep.subr.bf16.mxu0 0
    %356 = vmatpush1.bf16.msra.mxu0 0
    %357 = vmatprep.subr.bf16.mxu0 0
    %358 = vmatpush1.bf16.msra.mxu0 0
    %359 = vmatprep.subr.bf16.mxu0 0
    %360 = vmatpush1.bf16.msra.mxu0 0
    %361 = vmatprep.subr.bf16.mxu0 0
    %362 = vmatpush1.bf16.msra.mxu0 0
    %363 = vmatprep.subr.bf16.mxu0 0
    %364 = vmatpush1.bf16.msra.mxu0 0
    %365 = vmatprep.subr.bf16.mxu0 0
    %366 = vmatpush1.bf16.msra.mxu0 0
    %367 = vmatprep.mubr.bf16.mxu0 0
    %368 = vmatmul.mubr.bf16.gmra.mrb[0].mxu0 %v263
    %v369 = vpop.f32.mrb[0].mxu0
    %v370 = vadd.f32 %v285, %v369
    %v371 = vpop.f32.mrb[0].mxu0
    %v372 = vpop.f32.mrb[0].mxu0
    %v373 = vpop.f32.mrb[0].mxu0
    %374 = vdwg.mxu0
    %v375 = vmax.f32 %v370, 0.0
    %v376 = vpack.c.bf16 %v375, %v375
    %v377 = vld [vmem:[#allocation8] sm:$0xf]
    %v378 = vld [vmem:[#allocation8 + $0x4] sm:$0xf]
    %v379 = vld [vmem:[#allocation8 + $0x8] sm:$0xf]
    %v380 = vld [vmem:[#allocation8 + $0xc] sm:$0xf]
    %v381 = vld [vmem:[#allocation8 + $0x10] sm:$0xf]
    %v382 = vld [vmem:[#allocation8 + $0x14] sm:$0xf]
    %v383 = vld [vmem:[#allocation8 + $0x18] sm:$0xf]
    %v384 = vld [vmem:[#allocation8 + $0x1c] sm:$0xf]
    %v385 = vld [vmem:[#allocation8 + $0x20] sm:$0xf]
    %v386 = vld [vmem:[#allocation8 + $0x24] sm:$0xf]
    %v387 = vld [vmem:[#allocation8 + $0x28] sm:$0xf]
    %v388 = vld [vmem:[#allocation8 + $0x2c] sm:$0xf]
    %v389 = vld [vmem:[#allocation8 + $0x30] sm:$0xf]
    %v390 = vld [vmem:[#allocation8 + $0x34] sm:$0xf]
    %v391 = vld [vmem:[#allocation8 + $0x38] sm:$0xf]
    %v392 = vld [vmem:[#allocation8 + $0x3c] sm:$0xf]
    %v393 = vld [vmem:[#allocation14 + $0x2] sm:$0x1]
    %v395 = vlaneseq
    %v396 = vshrl.u32 %v395, 7
    %v397 = vsub.s32 0, %v396
    %v398 = vrot.slane %v393, %v397
    %v416 = vunpack.c.l.b16 %v377
    %v417 = vunpack.c.l.b16 %v378
    %v418 = vunpack.c.l.b16 %v379
    %v419 = vunpack.c.l.b16 %v380
    %v420 = vunpack.c.l.b16 %v381
    %v421 = vunpack.c.l.b16 %v382
    %v422 = vunpack.c.l.b16 %v383
    %v423 = vunpack.c.l.b16 %v384
    %v424 = vunpack.c.l.b16 %v385
    %v425 = vunpack.c.l.b16 %v386
    %v426 = vunpack.c.l.b16 %v387
    %v427 = vunpack.c.l.b16 %v388
    %v428 = vunpack.c.l.b16 %v389
    %v429 = vunpack.c.l.b16 %v390
    %v430 = vunpack.c.l.b16 %v391
    %v431 = vunpack.c.l.b16 %v392
    %v432 = vpack.c.b16 %v417, %v416
    %v433 = vpack.c.b16 %v419, %v418
    %v434 = vpack.c.b16 %v421, %v420
    %v435 = vpack.c.b16 %v423, %v422
    %v436 = vpack.c.b16 %v425, %v424
    %v437 = vpack.c.b16 %v427, %v426
    %v438 = vpack.c.b16 %v429, %v428
    %v439 = vpack.c.b16 %v431, %v430
    %448 = vmatprep.subr.bf16.mxu0 0
    %449 = vmatpush1.bf16.msra.mxu0 %v432
    %450 = vmatprep.subr.bf16.mxu0 0
    %451 = vmatpush1.bf16.msra.mxu0 %v433
    %452 = vmatprep.subr.bf16.mxu0 0
    %453 = vmatpush1.bf16.msra.mxu0 %v434
    %454 = vmatprep.subr.bf16.mxu0 0
    %455 = vmatpush1.bf16.msra.mxu0 %v435
    %456 = vmatprep.subr.bf16.mxu0 0
    %457 = vmatpush1.bf16.msra.mxu0 %v436
    %458 = vmatprep.subr.bf16.mxu0 0
    %459 = vmatpush1.bf16.msra.mxu0 %v437
    %460 = vmatprep.subr.bf16.mxu0 0
    %461 = vmatpush1.bf16.msra.mxu0 %v438
    %462 = vmatprep.subr.bf16.mxu0 0
    %463 = vmatpush1.bf16.msra.mxu0 %v439
    %464 = vmatprep.subr.bf16.mxu0 0
    %465 = vmatpush1.bf16.msra.mxu0 0
    %466 = vmatprep.subr.bf16.mxu0 0
    %467 = vmatpush1.bf16.msra.mxu0 0
    %468 = vmatprep.subr.bf16.mxu0 0
    %469 = vmatpush1.bf16.msra.mxu0 0
    %470 = vmatprep.subr.bf16.mxu0 0
    %471 = vmatpush1.bf16.msra.mxu0 0
    %472 = vmatprep.subr.bf16.mxu0 0
    %473 = vmatpush1.bf16.msra.mxu0 0
    %474 = vmatprep.subr.bf16.mxu0 0
    %475 = vmatpush1.bf16.msra.mxu0 0
    %476 = vmatprep.subr.bf16.mxu0 0
    %477 = vmatpush1.bf16.msra.mxu0 0
    %478 = vmatprep.subr.bf16.mxu0 0
    %479 = vmatpush1.bf16.msra.mxu0 0
    %480 = vmatprep.mubr.bf16.mxu0 0
    %481 = vmatmul.mubr.bf16.gmra.mrb[0].mxu0 %v376
    %v482 = vpop.f32.mrb[0].mxu0
    %v483 = vadd.f32 %v398, %v482
    %v484 = vpop.f32.mrb[0].mxu0
    %v485 = vpop.f32.mrb[0].mxu0
    %v486 = vpop.f32.mrb[0].mxu0
    %487 = vdwg.mxu0
    %v488 = vmax.f32 %v483, 0.0
    %v489 = vpack.c.bf16 %v488, %v488
    %v490 = vld [vmem:[#allocation10] sm:$0xf]
    %v491 = vld [vmem:[#allocation10 + $0x4] sm:$0xf]
    %v492 = vld [vmem:[#allocation10 + $0x8] sm:$0xf]
    %v493 = vld [vmem:[#allocation10 + $0xc] sm:$0xf]
    %v494 = vld [vmem:[#allocation10 + $0x10] sm:$0xf]
    %v495 = vld [vmem:[#allocation10 + $0x14] sm:$0xf]
    %v496 = vld [vmem:[#allocation10 + $0x18] sm:$0xf]
    %v497 = vld [vmem:[#allocation10 + $0x1c] sm:$0xf]
    %v498 = vld [vmem:[#allocation10 + $0x20] sm:$0xf]
    %v499 = vld [vmem:[#allocation10 + $0x24] sm:$0xf]
    %v500 = vld [vmem:[#allocation10 + $0x28] sm:$0xf]
    %v501 = vld [vmem:[#allocation10 + $0x2c] sm:$0xf]
    %v502 = vld [vmem:[#allocation10 + $0x30] sm:$0xf]
    %v503 = vld [vmem:[#allocation10 + $0x34] sm:$0xf]
    %v504 = vld [vmem:[#allocation10 + $0x38] sm:$0xf]
    %v505 = vld [vmem:[#allocation10 + $0x3c] sm:$0xf]
    %v506 = vld [vmem:[#allocation14 + $0x3] sm:$0x1]
    %v508 = vlaneseq
    %v509 = vshrl.u32 %v508, 7
    %v510 = vsub.s32 0, %v509
    %v511 = vrot.slane %v506, %v510
    %v529 = vunpack.c.l.b16 %v490
    %v530 = vunpack.c.l.b16 %v491
    %v531 = vunpack.c.l.b16 %v492
    %v532 = vunpack.c.l.b16 %v493
    %v533 = vunpack.c.l.b16 %v494
    %v534 = vunpack.c.l.b16 %v495
    %v535 = vunpack.c.l.b16 %v496
    %v536 = vunpack.c.l.b16 %v497
    %v537 = vunpack.c.l.b16 %v498
    %v538 = vunpack.c.l.b16 %v499
    %v539 = vunpack.c.l.b16 %v500
    %v540 = vunpack.c.l.b16 %v501
    %v541 = vunpack.c.l.b16 %v502
    %v542 = vunpack.c.l.b16 %v503
    %v543 = vunpack.c.l.b16 %v504
    %v544 = vunpack.c.l.b16 %v505
    %v545 = vpack.c.b16 %v530, %v529
    %v546 = vpack.c.b16 %v532, %v531
    %v547 = vpack.c.b16 %v534, %v533
    %v548 = vpack.c.b16 %v536, %v535
    %v549 = vpack.c.b16 %v538, %v537
    %v550 = vpack.c.b16 %v540, %v539
    %v551 = vpack.c.b16 %v542, %v541
    %v552 = vpack.c.b16 %v544, %v543
    %561 = vmatprep.subr.bf16.mxu0 0
    %562 = vmatpush1.bf16.msra.mxu0 %v545
    %563 = vmatprep.subr.bf16.mxu0 0
    %564 = vmatpush1.bf16.msra.mxu0 %v546
    %565 = vmatprep.subr.bf16.mxu0 0
    %566 = vmatpush1.bf16.msra.mxu0 %v547
    %567 = vmatprep.subr.bf16.mxu0 0
    %568 = vmatpush1.bf16.msra.mxu0 %v548
    %569 = vmatprep.subr.bf16.mxu0 0
    %570 = vmatpush1.bf16.msra.mxu0 %v549
    %571 = vmatprep.subr.bf16.mxu0 0
    %572 = vmatpush1.bf16.msra.mxu0 %v550
    %573 = vmatprep.subr.bf16.mxu0 0
    %574 = vmatpush1.bf16.msra.mxu0 %v551
    %575 = vmatprep.subr.bf16.mxu0 0
    %576 = vmatpush1.bf16.msra.mxu0 %v552
    %577 = vmatprep.subr.bf16.mxu0 0
    %578 = vmatpush1.bf16.msra.mxu0 0
    %579 = vmatprep.subr.bf16.mxu0 0
    %580 = vmatpush1.bf16.msra.mxu0 0
    %581 = vmatprep.subr.bf16.mxu0 0
    %582 = vmatpush1.bf16.msra.mxu0 0
    %583 = vmatprep.subr.bf16.mxu0 0
    %584 = vmatpush1.bf16.msra.mxu0 0
    %585 = vmatprep.subr.bf16.mxu0 0
    %586 = vmatpush1.bf16.msra.mxu0 0
    %587 = vmatprep.subr.bf16.mxu0 0
    %588 = vmatpush1.bf16.msra.mxu0 0
    %589 = vmatprep.subr.bf16.mxu0 0
    %590 = vmatpush1.bf16.msra.mxu0 0
    %591 = vmatprep.subr.bf16.mxu0 0
    %592 = vmatpush1.bf16.msra.mxu0 0
    %593 = vmatprep.mubr.bf16.mxu0 0
    %594 = vmatmul.mubr.bf16.gmra.mrb[0].mxu0 %v489
    %v595 = vpop.f32.mrb[0].mxu0
    %v596 = vadd.f32 %v511, %v595
    %v597 = vpop.f32.mrb[0].mxu0
    %v598 = vpop.f32.mrb[0].mxu0
    %v599 = vpop.f32.mrb[0].mxu0
    %600 = vdwg.mxu0
    %v601 = vmax.f32 %v596, 0.0
    %v602 = vpack.c.bf16 %v601, %v601
    %v603 = vld [vmem:[#allocation11] sm:$0xf]
    %v604 = vld [vmem:[#allocation11 + $0x4] sm:$0xf]
    %v605 = vld [vmem:[#allocation11 + $0x8] sm:$0xf]
    %v606 = vld [vmem:[#allocation11 + $0xc] sm:$0xf]
    %v607 = vld [vmem:[#allocation11 + $0x10] sm:$0xf]
    %v608 = vld [vmem:[#allocation11 + $0x14] sm:$0xf]
    %v609 = vld [vmem:[#allocation11 + $0x18] sm:$0xf]
    %v610 = vld [vmem:[#allocation11 + $0x1c] sm:$0xf]
    %v611 = vld [vmem:[#allocation11 + $0x20] sm:$0xf]
    %v612 = vld [vmem:[#allocation11 + $0x24] sm:$0xf]
    %v613 = vld [vmem:[#allocation11 + $0x28] sm:$0xf]
    %v614 = vld [vmem:[#allocation11 + $0x2c] sm:$0xf]
    %v615 = vld [vmem:[#allocation11 + $0x30] sm:$0xf]
    %v616 = vld [vmem:[#allocation11 + $0x34] sm:$0xf]
    %v617 = vld [vmem:[#allocation11 + $0x38] sm:$0xf]
    %v618 = vld [vmem:[#allocation11 + $0x3c] sm:$0xf]
    %v619 = vld [vmem:[#allocation14 + $0x4] sm:$0x1]
    %v621 = vlaneseq
    %v622 = vshrl.u32 %v621, 7
    %v623 = vsub.s32 0, %v622
    %v624 = vrot.slane %v619, %v623
    %v642 = vunpack.c.l.b16 %v603
    %v643 = vunpack.c.l.b16 %v604
    %v644 = vunpack.c.l.b16 %v605
    %v645 = vunpack.c.l.b16 %v606
    %v646 = vunpack.c.l.b16 %v607
    %v647 = vunpack.c.l.b16 %v608
    %v648 = vunpack.c.l.b16 %v609
    %v649 = vunpack.c.l.b16 %v610
    %v650 = vunpack.c.l.b16 %v611
    %v651 = vunpack.c.l.b16 %v612
    %v652 = vunpack.c.l.b16 %v613
    %v653 = vunpack.c.l.b16 %v614
    %v654 = vunpack.c.l.b16 %v615
    %v655 = vunpack.c.l.b16 %v616
    %v656 = vunpack.c.l.b16 %v617
    %v657 = vunpack.c.l.b16 %v618
    %v658 = vpack.c.b16 %v643, %v642
    %v659 = vpack.c.b16 %v645, %v644
    %v660 = vpack.c.b16 %v647, %v646
    %v661 = vpack.c.b16 %v649, %v648
    %v662 = vpack.c.b16 %v651, %v650
    %v663 = vpack.c.b16 %v653, %v652
    %v664 = vpack.c.b16 %v655, %v654
    %v665 = vpack.c.b16 %v657, %v656
    %674 = vmatprep.subr.bf16.mxu0 0
    %675 = vmatpush1.bf16.msra.mxu0 %v658
    %676 = vmatprep.subr.bf16.mxu0 0
    %677 = vmatpush1.bf16.msra.mxu0 %v659
    %678 = vmatprep.subr.bf16.mxu0 0
    %679 = vmatpush1.bf16.msra.mxu0 %v660
    %680 = vmatprep.subr.bf16.mxu0 0
    %681 = vmatpush1.bf16.msra.mxu0 %v661
    %682 = vmatprep.subr.bf16.mxu0 0
    %683 = vmatpush1.bf16.msra.mxu0 %v662
    %684 = vmatprep.subr.bf16.mxu0 0
    %685 = vmatpush1.bf16.msra.mxu0 %v663
    %686 = vmatprep.subr.bf16.mxu0 0
    %687 = vmatpush1.bf16.msra.mxu0 %v664
    %688 = vmatprep.subr.bf16.mxu0 0
    %689 = vmatpush1.bf16.msra.mxu0 %v665
    %690 = vmatprep.subr.bf16.mxu0 0
    %691 = vmatpush1.bf16.msra.mxu0 0
    %692 = vmatprep.subr.bf16.mxu0 0
    %693 = vmatpush1.bf16.msra.mxu0 0
    %694 = vmatprep.subr.bf16.mxu0 0
    %695 = vmatpush1.bf16.msra.mxu0 0
    %696 = vmatprep.subr.bf16.mxu0 0
    %697 = vmatpush1.bf16.msra.mxu0 0
    %698 = vmatprep.subr.bf16.mxu0 0
    %699 = vmatpush1.bf16.msra.mxu0 0
    %700 = vmatprep.subr.bf16.mxu0 0
    %701 = vmatpush1.bf16.msra.mxu0 0
    %702 = vmatprep.subr.bf16.mxu0 0
    %703 = vmatpush1.bf16.msra.mxu0 0
    %704 = vmatprep.subr.bf16.mxu0 0
    %705 = vmatpush1.bf16.msra.mxu0 0
    %706 = vmatprep.mubr.bf16.mxu0 0
    %707 = vmatmul.mubr.bf16.gmra.mrb[0].mxu0 %v602
    %v708 = vpop.f32.mrb[0].mxu0
    %v709 = vadd.f32 %v624, %v708
    %v710 = vpop.f32.mrb[0].mxu0
    %v711 = vpop.f32.mrb[0].mxu0
    %v712 = vpop.f32.mrb[0].mxu0
    %713 = vdwg.mxu0
    %v714 = vmax.f32 %v709, 0.0
    %v715 = vpack.c.bf16 %v714, %v714
    %v716 = vld [vmem:[#allocation13] sm:$0xf]
    %v717 = vld [vmem:[#allocation13 + $0x4] sm:$0xf]
    %v718 = vld [vmem:[#allocation13 + $0x8] sm:$0xf]
    %v719 = vld [vmem:[#allocation13 + $0xc] sm:$0xf]
    %v720 = vld [vmem:[#allocation13 + $0x10] sm:$0xf]
    %v721 = vld [vmem:[#allocation13 + $0x14] sm:$0xf]
    %v722 = vld [vmem:[#allocation13 + $0x18] sm:$0xf]
    %v723 = vld [vmem:[#allocation13 + $0x1c] sm:$0xf]
    %v724 = vld [vmem:[#allocation13 + $0x20] sm:$0xf]
    %v725 = vld [vmem:[#allocation13 + $0x24] sm:$0xf]
    %v726 = vld [vmem:[#allocation13 + $0x28] sm:$0xf]
    %v727 = vld [vmem:[#allocation13 + $0x2c] sm:$0xf]
    %v728 = vld [vmem:[#allocation13 + $0x30] sm:$0xf]
    %v729 = vld [vmem:[#allocation13 + $0x34] sm:$0xf]
    %v730 = vld [vmem:[#allocation13 + $0x38] sm:$0xf]
    %v731 = vld [vmem:[#allocation13 + $0x3c] sm:$0xf]
    %v732 = vld [vmem:[#allocation16] sm:$0x1]
    %v734 = vlaneseq
    %v735 = vshrl.u32 %v734, 7
    %v736 = vsub.s32 0, %v735
    %v737 = vrot.slane %v732, %v736
    %v755 = vunpack.c.l.b16 %v716
    %v756 = vunpack.c.l.b16 %v717
    %v757 = vunpack.c.l.b16 %v718
    %v758 = vunpack.c.l.b16 %v719
    %v759 = vunpack.c.l.b16 %v720
    %v760 = vunpack.c.l.b16 %v721
    %v761 = vunpack.c.l.b16 %v722
    %v762 = vunpack.c.l.b16 %v723
    %v763 = vunpack.c.l.b16 %v724
    %v764 = vunpack.c.l.b16 %v725
    %v765 = vunpack.c.l.b16 %v726
    %v766 = vunpack.c.l.b16 %v727
    %v767 = vunpack.c.l.b16 %v728
    %v768 = vunpack.c.l.b16 %v729
    %v769 = vunpack.c.l.b16 %v730
    %v770 = vunpack.c.l.b16 %v731
    %v771 = vpack.c.b16 %v756, %v755
    %v772 = vpack.c.b16 %v758, %v757
    %v773 = vpack.c.b16 %v760, %v759
    %v774 = vpack.c.b16 %v762, %v761
    %v775 = vpack.c.b16 %v764, %v763
    %v776 = vpack.c.b16 %v766, %v765
    %v777 = vpack.c.b16 %v768, %v767
    %v778 = vpack.c.b16 %v770, %v769
    %787 = vmatprep.subr.bf16.mxu0 0
    %788 = vmatpush1.bf16.msra.mxu0 %v771
    %789 = vmatprep.subr.bf16.mxu0 0
    %790 = vmatpush1.bf16.msra.mxu0 %v772
    %791 = vmatprep.subr.bf16.mxu0 0
    %792 = vmatpush1.bf16.msra.mxu0 %v773
    %793 = vmatprep.subr.bf16.mxu0 0
    %794 = vmatpush1.bf16.msra.mxu0 %v774
    %795 = vmatprep.subr.bf16.mxu0 0
    %796 = vmatpush1.bf16.msra.mxu0 %v775
    %797 = vmatprep.subr.bf16.mxu0 0
    %798 = vmatpush1.bf16.msra.mxu0 %v776
    %799 = vmatprep.subr.bf16.mxu0 0
    %800 = vmatpush1.bf16.msra.mxu0 %v777
    %801 = vmatprep.subr.bf16.mxu0 0
    %802 = vmatpush1.bf16.msra.mxu0 %v778
    %803 = vmatprep.subr.bf16.mxu0 0
    %804 = vmatpush1.bf16.msra.mxu0 0
    %805 = vmatprep.subr.bf16.mxu0 0
    %806 = vmatpush1.bf16.msra.mxu0 0
    %807 = vmatprep.subr.bf16.mxu0 0
    %808 = vmatpush1.bf16.msra.mxu0 0
    %809 = vmatprep.subr.bf16.mxu0 0
    %810 = vmatpush1.bf16.msra.mxu0 0
    %811 = vmatprep.subr.bf16.mxu0 0
    %812 = vmatpush1.bf16.msra.mxu0 0
    %813 = vmatprep.subr.bf16.mxu0 0
    %814 = vmatpush1.bf16.msra.mxu0 0
    %815 = vmatprep.subr.bf16.mxu0 0
    %816 = vmatpush1.bf16.msra.mxu0 0
    %817 = vmatprep.subr.bf16.mxu0 0
    %818 = vmatpush1.bf16.msra.mxu0 0
    %819 = vmatprep.mubr.bf16.mxu0 0
    %820 = vmatmul.mubr.bf16.gmra.mrb[0].mxu0 %v715
    %v821 = vpop.f32.mrb[0].mxu0
    %v822 = vadd.f32 %v737, %v821
    %v823 = vpop.f32.mrb[0].mxu0
    %v824 = vpop.f32.mrb[0].mxu0
    %v825 = vpop.f32.mrb[0].mxu0
    %826 = vdwg.mxu0
    %827 = vst [vmem:[#allocation17] sm:$0xff] %v822
    // Predicated region
    $region74: #{tpu_custom_call.1} parent=1 // pred_check
      _
    $region75: #{tpu_custom_call.1} parent=1 // pred_check_branch
      %829 = sbr.rel (0) target = $region77
    $region76: #{tpu_custom_call.1} parent=1 // pred_region
      %s831 = ssub.s32 128, 128
      %832 = vsyncadd [#allocation4], %s831
      %s834 = sshll.u32 [#allocation17], 4
      %s835 = int_to_ptr.vmem [resolvable:$true] %s834
      %837 = dma.vmem_to_hbm [thread:$0]  %s835, 128, %s9, [#allocation4]
    $region77: #{tpu_custom_call.1} parent=1 // pred_fallthru
      _
    // Predicated region
    $region78: #{tpu_custom_call.1} parent=1 // pred_check
      _
    $region79: #{tpu_custom_call.1} parent=1 // pred_check_branch
      %839 = sbr.rel (0) target = $region81
    $region80: #{tpu_custom_call.1} parent=1 // pred_region
      %840 = dma.done [#allocation4], 128
    $region81: #{tpu_custom_call.1} parent=1 // pred_fallthru
      _
    %841 = vsyncpa [#allocation3], 1
    %842 = vsyncpa [#allocation6], 1
    %843 = vsyncpa [#allocation9], 1
    %844 = vsyncpa [#allocation12], 1
    %845 = vsyncpa [#allocation15], 1
    %846 = vsyncpa [#allocation4], 1

// kernel: tpu_custom_call.1
$region0: #{tpu_custom_call.1}
  #allocation0 [shape = 'u32[]', space=smem, size = 0x4, offset = 0x4, fixed_abs, tag = 'smem constant byte address 0x4 - core index']
  #allocation1 [shape = 'u32[144,128]{1,0:T(1,128)}', space=vmem, size = 0x12000, scoped, tag = 'internal scratch']
  %s0 = inlined_call_operand.hbm [shape: bf16[8,128], index: 0, kind: input, shape index: {}]
  %s1 = inlined_call_operand.hbm [shape: bf16[128,128], index: 1, kind: input, shape index: {}]
  %s2 = inlined_call_operand.hbm [shape: bf16[128,128], index: 2, kind: input, shape index: {}]
  %s3 = inlined_call_operand.hbm [shape: bf16[128,128], index: 3, kind: input, shape index: {}]
  %s4 = inlined_call_operand.hbm [shape: bf16[128,128], index: 4, kind: input, shape index: {}]
  %s5 = inlined_call_operand.hbm [shape: bf16[128,128], index: 5, kind: input, shape index: {}]
  %s6 = inlined_call_operand.hbm [shape: bf16[128,128], index: 6, kind: input, shape index: {}]
  %s7 = inlined_call_operand.hbm [shape: f32[1,640], index: 7, kind: input, shape index: {}]
  %s8 = inlined_call_operand.hbm [shape: f32[1,128], index: 8, kind: input, shape index: {}]
  %s9 = inlined_call_operand.hbm [shape: f32[8,128], index: 9, kind: output, shape index: {}]
  %s10 = sld [smem:[#allocation0]]
  $region82: #{tpu_custom_call.1} parent=0
    _
  %s12 = ssub.s32 1, %s10
  %s13 = scalar_select 0, %s12, %s10
  $region1: #{tpu_custom_call.1} parent=0
    #allocation2 [shape = 'u8[2048]{0}', space=vmem, size = 0x800, scoped, tag = 'input window, operand 0, single buffered']
    #allocation3 [shape = 's32[1]{0}', space=sflag, size = 0x4, scoped, tag = 'scoped memory for tpu_custom_call.1']
    #allocation4 [shape = 's32[1]{0}', space=sflag, size = 0x4, scoped, tag = 'scoped memory for tpu_custom_call.1']
    #allocation5 [shape = 'u8[32768]{0}', space=vmem, size = 0x8000, scoped, tag = 'input window, operand 1, single buffered']
    #allocation6 [shape = 's32[1]{0}', space=sflag, size = 0x4, scoped, tag = 'scoped memory for tpu_custom_call.1']
    #allocation7 [shape = 'u8[32768]{0}', space=vmem, size = 0x8000, scoped, tag = 'input window, operand 2, single buffered']
    #allocation8 [shape = 'u8[32768]{0}', space=vmem, size = 0x8000, scoped, tag = 'input window, operand 3, single buffered']
    #allocation9 [shape = 's32[1]{0}', space=sflag, size = 0x4, scoped, tag = 'scoped memory for tpu_custom_call.1']
    #allocation10 [shape = 'u8[32768]{0}', space=vmem, size = 0x8000, scoped, tag = 'input window, operand 4, single buffered']
    #allocation11 [shape = 'u8[32768]{0}', space=vmem, size = 0x8000, scoped, tag = 'input window, operand 5, single buffered']
    #allocation12 [shape = 's32[1]{0}', space=sflag, size = 0x4, scoped, tag = 'scoped memory for tpu_custom_call.1']
    #allocation13 [shape = 'u8[32768]{0}', space=vmem, size = 0x8000, scoped, tag = 'input window, operand 6, single buffered']
    #allocation14 [shape = 'u8[2560]{0}', space=vmem, size = 0xc00, scoped, tag = 'input window, operand 7, single buffered']
    #allocation15 [shape = 's32[1]{0}', space=sflag, size = 0x4, scoped, tag = 'scoped memory for tpu_custom_call.1']
    #allocation16 [shape = 'u8[512]{0}', space=vmem, size = 0x400, scoped, tag = 'input window, operand 8, single buffered']
    #allocation17 [shape = 'u8[4096]{0}', space=vmem, size = 0x1000, scoped, tag = 'output window, operand 0, single buffered']
    %14 = vsyncpa [#allocation3], 0
    %15 = vsyncpa [#allocation6], 0
    %16 = vsyncpa [#allocation9], 0
    %17 = vsyncpa [#allocation12], 0
    %18 = vsyncpa [#allocation15], 0
    %19 = vsyncpa [#allocation4], 0
    // Predicated region
    $region2: #{tpu_custom_call.1} parent=1 // pred_check
      _
    $region3: #{tpu_custom_call.1} parent=1 // pred_check_branch
      %21 = sbr.rel (0) target = $region5
    $region4: #{tpu_custom_call.1} parent=1 // pred_region
      %s23 = ssub.s32 64, 64
      %24 = vsyncadd [#allocation3], %s23
      %s26 = sshll.u32 [#allocation2], 4
      %s27 = int_to_ptr.vmem [resolvable:$true] %s26
      %29 = dma.hbm_to_vmem [thread:$0]  %s0, 64, %s27, [#allocation3]
    $region5: #{tpu_custom_call.1} parent=1 // pred_fallthru
      _
    // Predicated region
    $region6: #{tpu_custom_call.1} parent=1 // pred_check
      _
    $region7: #{tpu_custom_call.1} parent=1 // pred_check_branch
      %31 = sbr.rel (0) target = $region9
    $region8: #{tpu_custom_call.1} parent=1 // pred_region
      %s33 = ssub.s32 1024, 1024
      %34 = vsyncadd [#allocation6], %s33
      %s35 = sshll.u32 [#allocation5], 4
      %s36 = int_to_ptr.vmem [resolvable:$true] %s35
      %41 = dma.hbm_to_vmem [thread:$0]  %s1, 1024, %s36, [#allocation6], 64, 64, 4
    $region9: #{tpu_custom_call.1} parent=1 // pred_fallthru
      _
    // Predicated region
    $region10: #{tpu_custom_call.1} parent=1 // pred_check
      _
    $region11: #{tpu_custom_call.1} parent=1 // pred_check_branch
      %43 = sbr.rel (0) target = $region13
    $region12: #{tpu_custom_call.1} parent=1 // pred_region
      %s45 = ssub.s32 1024, 1024
      %46 = vsyncadd [#allocation6], %s45
      %s47 = sshll.u32 [#allocation7], 4
      %s48 = int_to_ptr.vmem [resolvable:$true] %s47
      %53 = dma.hbm_to_vmem [thread:$0]  %s2, 1024, %s48, [#allocation6], 64, 64, 4
    $region13: #{tpu_custom_call.1} parent=1 // pred_fallthru
      _
    // Predicated region
    $region14: #{tpu_custom_call.1} parent=1 // pred_check
      _
    $region15: #{tpu_custom_call.1} parent=1 // pred_check_branch
      %55 = sbr.rel (0) target = $region17
    $region16: #{tpu_custom_call.1} parent=1 // pred_region
      %s57 = ssub.s32 1024, 1024
      %58 = vsyncadd [#allocation9], %s57
      %s59 = sshll.u32 [#allocation8], 4
      %s60 = int_to_ptr.vmem [resolvable:$true] %s59
      %65 = dma.hbm_to_vmem [thread:$0]  %s3, 1024, %s60, [#allocation9], 64, 64, 4
    $region17: #{tpu_custom_call.1} parent=1 // pred_fallthru
      _
    // Predicated region
    $region18: #{tpu_custom_call.1} parent=1 // pred_check
      _
    $region19: #{tpu_custom_call.1} parent=1 // pred_check_branch
      %67 = sbr.rel (0) target = $region21
    $region20: #{tpu_custom_call.1} parent=1 // pred_region
      %s69 = ssub.s32 1024, 1024
      %70 = vsyncadd [#allocation9], %s69
      %s71 = sshll.u32 [#allocation10], 4
      %s72 = int_to_ptr.vmem [resolvable:$true] %s71
      %77 = dma.hbm_to_vmem [thread:$0]  %s4, 1024, %s72, [#allocation9], 64, 64, 4
    $region21: #{tpu_custom_call.1} parent=1 // pred_fallthru
      _
    // Predicated region
    $region22: #{tpu_custom_call.1} parent=1 // pred_check
      _
    $region23: #{tpu_custom_call.1} parent=1 // pred_check_branch
      %79 = sbr.rel (0) target = $region25
    $region24: #{tpu_custom_call.1} parent=1 // pred_region
      %s81 = ssub.s32 1024, 1024
      %82 = vsyncadd [#allocation12], %s81
      %s83 = sshll.u32 [#allocation11], 4
      %s84 = int_to_ptr.vmem [resolvable:$true] %s83
      %89 = dma.hbm_to_vmem [thread:$0]  %s5, 1024, %s84, [#allocation12], 64, 64, 4
    $region25: #{tpu_custom_call.1} parent=1 // pred_fallthru
      _
    // Predicated region
    $region26: #{tpu_custom_call.1} parent=1 // pred_check
      _
    $region27: #{tpu_custom_call.1} parent=1 // pred_check_branch
      %91 = sbr.rel (0) target = $region29
    $region28: #{tpu_custom_call.1} parent=1 // pred_region
      %s93 = ssub.s32 1024, 1024
      %94 = vsyncadd [#allocation12], %s93
      %s95 = sshll.u32 [#allocation13], 4
      %s96 = int_to_ptr.vmem [resolvable:$true] %s95
      %101 = dma.hbm_to_vmem [thread:$0]  %s6, 1024, %s96, [#allocation12], 64, 64, 4
    $region29: #{tpu_custom_call.1} parent=1 // pred_fallthru
      _
    // Predicated region
    $region30: #{tpu_custom_call.1} parent=1 // pred_check
      _
    $region31: #{tpu_custom_call.1} parent=1 // pred_check_branch
      %103 = sbr.rel (0) target = $region33
    $region32: #{tpu_custom_call.1} parent=1 // pred_region
      %s105 = ssub.s32 80, 80
      %106 = vsyncadd [#allocation15], %s105
      %s108 = sshll.u32 [#allocation14], 4
      %s109 = int_to_ptr.vmem [resolvable:$true] %s108
      %111 = dma.hbm_to_vmem [thread:$0]  %s7, 80, %s109, [#allocation15]
    $region33: #{tpu_custom_call.1} parent=1 // pred_fallthru
      _
    // Predicated region
    $region34: #{tpu_custom_call.1} parent=1 // pred_check
      _
    $region35: #{tpu_custom_call.1} parent=1 // pred_check_branch
      %113 = sbr.rel (0) target = $region37
    $region36: #{tpu_custom_call.1} parent=1 // pred_region
      %s115 = ssub.s32 16, 16
      %116 = vsyncadd [#allocation15], %s115
      %s118 = sshll.u32 [#allocation16], 4
      %s119 = int_to_ptr.vmem [resolvable:$true] %s118
      %121 = dma.hbm_to_vmem [thread:$0]  %s8, 16, %s119, [#allocation15]
    $region37: #{tpu_custom_call.1} parent=1 // pred_fallthru
      _
    // Predicated region
    $region38: #{tpu_custom_call.1} parent=1 // pred_check
      _
    $region39: #{tpu_custom_call.1} parent=1 // pred_check_branch
      %123 = sbr.rel (0) target = $region41
    $region40: #{tpu_custom_call.1} parent=1 // pred_region
      %124 = dma.done [#allocation3], 64
    $region41: #{tpu_custom_call.1} parent=1 // pred_fallthru
      _
    // Predicated region
    $region42: #{tpu_custom_call.1} parent=1 // pred_check
      _
    $region43: #{tpu_custom_call.1} parent=1 // pred_check_branch
      %126 = sbr.rel (0) target = $region45
    $region44: #{tpu_custom_call.1} parent=1 // pred_region
      %127 = dma.done [#allocation6], 1024
    $region45: #{tpu_custom_call.1} parent=1 // pred_fallthru
      _
    // Predicated region
    $region46: #{tpu_custom_call.1} parent=1 // pred_check
      _
    $region47: #{tpu_custom_call.1} parent=1 // pred_check_branch
      %129 = sbr.rel (0) target = $region49
    $region48: #{tpu_custom_call.1} parent=1 // pred_region
      %130 = dma.done [#allocation6], 1024
    $region49: #{tpu_custom_call.1} parent=1 // pred_fallthru
      _
    // Predicated region
    $region50: #{tpu_custom_call.1} parent=1 // pred_check
      _
    $region51: #{tpu_custom_call.1} parent=1 // pred_check_branch
      %132 = sbr.rel (0) target = $region53
    $region52: #{tpu_custom_call.1} parent=1 // pred_region
      %133 = dma.done [#allocation9], 1024
    $region53: #{tpu_custom_call.1} parent=1 // pred_fallthru
      _
    // Predicated region
    $region54: #{tpu_custom_call.1} parent=1 // pred_check
      _
    $region55: #{tpu_custom_call.1} parent=1 // pred_check_branch
      %135 = sbr.rel (0) target = $region57
    $region56: #{tpu_custom_call.1} parent=1 // pred_region
      %136 = dma.done [#allocation9], 1024
    $region57: #{tpu_custom_call.1} parent=1 // pred_fallthru
      _
    // Predicated region
    $region58: #{tpu_custom_call.1} parent=1 // pred_check
      _
    $region59: #{tpu_custom_call.1} parent=1 // pred_check_branch
      %138 = sbr.rel (0) target = $region61
    $region60: #{tpu_custom_call.1} parent=1 // pred_region
      %139 = dma.done [#allocation12], 1024
    $region61: #{tpu_custom_call.1} parent=1 // pred_fallthru
      _
    // Predicated region
    $region62: #{tpu_custom_call.1} parent=1 // pred_check
      _
    $region63: #{tpu_custom_call.1} parent=1 // pred_check_branch
      %141 = sbr.rel (0) target = $region65
    $region64: #{tpu_custom_call.1} parent=1 // pred_region
      %142 = dma.done [#allocation12], 1024
    $region65: #{tpu_custom_call.1} parent=1 // pred_fallthru
      _
    // Predicated region
    $region66: #{tpu_custom_call.1} parent=1 // pred_check
      _
    $region67: #{tpu_custom_call.1} parent=1 // pred_check_branch
      %144 = sbr.rel (0) target = $region69
    $region68: #{tpu_custom_call.1} parent=1 // pred_region
      %145 = dma.done [#allocation15], 80
    $region69: #{tpu_custom_call.1} parent=1 // pred_fallthru
      _
    // Predicated region
    $region70: #{tpu_custom_call.1} parent=1 // pred_check
      _
    $region71: #{tpu_custom_call.1} parent=1 // pred_check_branch
      %147 = sbr.rel (0) target = $region73
    $region72: #{tpu_custom_call.1} parent=1 // pred_region
      %148 = dma.done [#allocation15], 16
    $region73: #{tpu_custom_call.1} parent=1 // pred_fallthru
      _
    %v150 = vld [vmem:[#allocation2] sm:$0xf]
    %v151 = vld [vmem:[#allocation5] sm:$0xf]
    %v152 = vld [vmem:[#allocation5 + $0x4] sm:$0xf]
    %v153 = vld [vmem:[#allocation5 + $0x8] sm:$0xf]
    %v154 = vld [vmem:[#allocation5 + $0xc] sm:$0xf]
    %v155 = vld [vmem:[#allocation5 + $0x10] sm:$0xf]
    %v156 = vld [vmem:[#allocation5 + $0x14] sm:$0xf]
    %v157 = vld [vmem:[#allocation5 + $0x18] sm:$0xf]
    %v158 = vld [vmem:[#allocation5 + $0x1c] sm:$0xf]
    %v159 = vld [vmem:[#allocation5 + $0x20] sm:$0xf]
    %v160 = vld [vmem:[#allocation5 + $0x24] sm:$0xf]
    %v161 = vld [vmem:[#allocation5 + $0x28] sm:$0xf]
    %v162 = vld [vmem:[#allocation5 + $0x2c] sm:$0xf]
    %v163 = vld [vmem:[#allocation5 + $0x30] sm:$0xf]
    %v164 = vld [vmem:[#allocation5 + $0x34] sm:$0xf]
    %v165 = vld [vmem:[#allocation5 + $0x38] sm:$0xf]
    %v166 = vld [vmem:[#allocation5 + $0x3c] sm:$0xf]
    %v167 = vld [vmem:[#allocation14] sm:$0x1]
    %v169 = vlaneseq
    %v170 = vshrl.u32 %v169, 7
    %v171 = vsub.s32 0, %v170
    %v172 = vrot.slane %v167, %v171
    %v190 = vunpack.c.l.b16 %v151
    %v191 = vunpack.c.l.b16 %v152
    %v192 = vunpack.c.l.b16 %v153
    %v193 = vunpack.c.l.b16 %v154
    %v194 = vunpack.c.l.b16 %v155
    %v195 = vunpack.c.l.b16 %v156
    %v196 = vunpack.c.l.b16 %v157
    %v197 = vunpack.c.l.b16 %v158
    %v198 = vunpack.c.l.b16 %v159
    %v199 = vunpack.c.l.b16 %v160
    %v200 = vunpack.c.l.b16 %v161
    %v201 = vunpack.c.l.b16 %v162
    %v202 = vunpack.c.l.b16 %v163
    %v203 = vunpack.c.l.b16 %v164
    %v204 = vunpack.c.l.b16 %v165
    %v205 = vunpack.c.l.b16 %v166
    %v206 = vpack.c.b16 %v191, %v190
    %v207 = vpack.c.b16 %v193, %v192
    %v208 = vpack.c.b16 %v195, %v194
    %v209 = vpack.c.b16 %v197, %v196
    %v210 = vpack.c.b16 %v199, %v198
    %v211 = vpack.c.b16 %v201, %v200
    %v212 = vpack.c.b16 %v203, %v202
    %v213 = vpack.c.b16 %v205, %v204
    %222 = vmatprep.subr.bf16.mxu0 0
    %223 = vmatpush1.bf16.msra.mxu0 %v206
    %224 = vmatprep.subr.bf16.mxu0 0
    %225 = vmatpush1.bf16.msra.mxu0 %v207
    %226 = vmatprep.subr.bf16.mxu0 0
    %227 = vmatpush1.bf16.msra.mxu0 %v208
    %228 = vmatprep.subr.bf16.mxu0 0
    %229 = vmatpush1.bf16.msra.mxu0 %v209
    %230 = vmatprep.subr.bf16.mxu0 0
    %231 = vmatpush1.bf16.msra.mxu0 %v210
    %232 = vmatprep.subr.bf16.mxu0 0
    %233 = vmatpush1.bf16.msra.mxu0 %v211
    %234 = vmatprep.subr.bf16.mxu0 0
    %235 = vmatpush1.bf16.msra.mxu0 %v212
    %236 = vmatprep.subr.bf16.mxu0 0
    %237 = vmatpush1.bf16.msra.mxu0 %v213
    %238 = vmatprep.subr.bf16.mxu0 0
    %239 = vmatpush1.bf16.msra.mxu0 0
    %240 = vmatprep.subr.bf16.mxu0 0
    %241 = vmatpush1.bf16.msra.mxu0 0
    %242 = vmatprep.subr.bf16.mxu0 0
    %243 = vmatpush1.bf16.msra.mxu0 0
    %244 = vmatprep.subr.bf16.mxu0 0
    %245 = vmatpush1.bf16.msra.mxu0 0
    %246 = vmatprep.subr.bf16.mxu0 0
    %247 = vmatpush1.bf16.msra.mxu0 0
    %248 = vmatprep.subr.bf16.mxu0 0
    %249 = vmatpush1.bf16.msra.mxu0 0
    %250 = vmatprep.subr.bf16.mxu0 0
    %251 = vmatpush1.bf16.msra.mxu0 0
    %252 = vmatprep.subr.bf16.mxu0 0
    %253 = vmatpush1.bf16.msra.mxu0 0
    %254 = vmatprep.mubr.bf16.mxu0 0
    %255 = vmatmul.mubr.bf16.gmra.mrb[0].mxu0 %v150
    %v256 = vpop.f32.mrb[0].mxu0
    %v257 = vadd.f32 %v172, %v256
    %v258 = vpop.f32.mrb[0].mxu0
    %v259 = vpop.f32.mrb[0].mxu0
    %v260 = vpop.f32.mrb[0].mxu0
    %261 = vdwg.mxu0
    %v262 = vmax.f32 %v257, 0.0
    %v263 = vpack.c.bf16 %v262, %v262
    %v264 = vld [vmem:[#allocation7] sm:$0xf]
    %v265 = vld [vmem:[#allocation7 + $0x4] sm:$0xf]
    %v266 = vld [vmem:[#allocation7 + $0x8] sm:$0xf]
    %v267 = vld [vmem:[#allocation7 + $0xc] sm:$0xf]
    %v268 = vld [vmem:[#allocation7 + $0x10] sm:$0xf]
    %v269 = vld [vmem:[#allocation7 + $0x14] sm:$0xf]
    %v270 = vld [vmem:[#allocation7 + $0x18] sm:$0xf]
    %v271 = vld [vmem:[#allocation7 + $0x1c] sm:$0xf]
    %v272 = vld [vmem:[#allocation7 + $0x20] sm:$0xf]
    %v273 = vld [vmem:[#allocation7 + $0x24] sm:$0xf]
    %v274 = vld [vmem:[#allocation7 + $0x28] sm:$0xf]
    %v275 = vld [vmem:[#allocation7 + $0x2c] sm:$0xf]
    %v276 = vld [vmem:[#allocation7 + $0x30] sm:$0xf]
    %v277 = vld [vmem:[#allocation7 + $0x34] sm:$0xf]
    %v278 = vld [vmem:[#allocation7 + $0x38] sm:$0xf]
    %v279 = vld [vmem:[#allocation7 + $0x3c] sm:$0xf]
    %v280 = vld [vmem:[#allocation14 + $0x1] sm:$0x1]
    %v282 = vlaneseq
    %v283 = vshrl.u32 %v282, 7
    %v284 = vsub.s32 0, %v283
    %v285 = vrot.slane %v280, %v284
    %v303 = vunpack.c.l.b16 %v264
    %v304 = vunpack.c.l.b16 %v265
    %v305 = vunpack.c.l.b16 %v266
    %v306 = vunpack.c.l.b16 %v267
    %v307 = vunpack.c.l.b16 %v268
    %v308 = vunpack.c.l.b16 %v269
    %v309 = vunpack.c.l.b16 %v270
    %v310 = vunpack.c.l.b16 %v271
    %v311 = vunpack.c.l.b16 %v272
    %v312 = vunpack.c.l.b16 %v273
    %v313 = vunpack.c.l.b16 %v274
    %v314 = vunpack.c.l.b16 %v275
    %v315 = vunpack.c.l.b16 %v276
    %v316 = vunpack.c.l.b16 %v277
    %v317 = vunpack.c.l.b16 %v278
    %v318 = vunpack.c.l.b16 %v279
    %v319 = vpack.c.b16 %v304, %v303
    %v320 = vpack.c.b16 %v306, %v305
    %v321 = vpack.c.b16 %v308, %v307
    %v322 = vpack.c.b16 %v310, %v309
    %v323 = vpack.c.b16 %v312, %v311
    %v324 = vpack.c.b16 %v314, %v313
    %v325 = vpack.c.b16 %v316, %v315
    %v326 = vpack.c.b16 %v318, %v317
    %335 = vmatprep.subr.bf16.mxu0 0
    %336 = vmatpush1.bf16.msra.mxu0 %v319
    %337 = vmatprep.subr.bf16.mxu0 0
    %338 = vmatpush1.bf16.msra.mxu0 %v320
    %339 = vmatprep.subr.bf16.mxu0 0
    %340 = vmatpush1.bf16.msra.mxu0 %v321
    %341 = vmatprep.subr.bf16.mxu0 0
    %342 = vmatpush1.bf16.msra.mxu0 %v322
    %343 = vmatprep.subr.bf16.mxu0 0
    %344 = vmatpush1.bf16.msra.mxu0 %v323
    %345 = vmatprep.subr.bf16.mxu0 0
    %346 = vmatpush1.bf16.msra.mxu0 %v324
    %347 = vmatprep.subr.bf16.mxu0 0
    %348 = vmatpush1.bf16.msra.mxu0 %v325
    %349 = vmatprep.subr.bf16.mxu0 0
    %350 = vmatpush1.bf16.msra.mxu0 %v326
    %351 = vmatprep.subr.bf16.mxu0 0
    %352 = vmatpush1.bf16.msra.mxu0 0
    %353 = vmatprep.subr.bf16.mxu0 0
    %354 = vmatpush1.bf16.msra.mxu0 0
    %355 = vmatprep.subr.bf16.mxu0 0
    %356 = vmatpush1.bf16.msra.mxu0 0
    %357 = vmatprep.subr.bf16.mxu0 0
    %358 = vmatpush1.bf16.msra.mxu0 0
    %359 = vmatprep.subr.bf16.mxu0 0
    %360 = vmatpush1.bf16.msra.mxu0 0
    %361 = vmatprep.subr.bf16.mxu0 0
    %362 = vmatpush1.bf16.msra.mxu0 0
    %363 = vmatprep.subr.bf16.mxu0 0
    %364 = vmatpush1.bf16.msra.mxu0 0
    %365 = vmatprep.subr.bf16.mxu0 0
    %366 = vmatpush1.bf16.msra.mxu0 0
    %367 = vmatprep.mubr.bf16.mxu0 0
    %368 = vmatmul.mubr.bf16.gmra.mrb[0].mxu0 %v263
    %v369 = vpop.f32.mrb[0].mxu0
    %v370 = vadd.f32 %v285, %v369
    %v371 = vpop.f32.mrb[0].mxu0
    %v372 = vpop.f32.mrb[0].mxu0
    %v373 = vpop.f32.mrb[0].mxu0
    %374 = vdwg.mxu0
    %v375 = vmax.f32 %v370, 0.0
    %v376 = vpack.c.bf16 %v375, %v375
    %v377 = vld [vmem:[#allocation8] sm:$0xf]
    %v378 = vld [vmem:[#allocation8 + $0x4] sm:$0xf]
    %v379 = vld [vmem:[#allocation8 + $0x8] sm:$0xf]
    %v380 = vld [vmem:[#allocation8 + $0xc] sm:$0xf]
    %v381 = vld [vmem:[#allocation8 + $0x10] sm:$0xf]
    %v382 = vld [vmem:[#allocation8 + $0x14] sm:$0xf]
    %v383 = vld [vmem:[#allocation8 + $0x18] sm:$0xf]
    %v384 = vld [vmem:[#allocation8 + $0x1c] sm:$0xf]
    %v385 = vld [vmem:[#allocation8 + $0x20] sm:$0xf]
    %v386 = vld [vmem:[#allocation8 + $0x24] sm:$0xf]
    %v387 = vld [vmem:[#allocation8 + $0x28] sm:$0xf]
    %v388 = vld [vmem:[#allocation8 + $0x2c] sm:$0xf]
    %v389 = vld [vmem:[#allocation8 + $0x30] sm:$0xf]
    %v390 = vld [vmem:[#allocation8 + $0x34] sm:$0xf]
    %v391 = vld [vmem:[#allocation8 + $0x38] sm:$0xf]
    %v392 = vld [vmem:[#allocation8 + $0x3c] sm:$0xf]
    %v393 = vld [vmem:[#allocation14 + $0x2] sm:$0x1]
    %v395 = vlaneseq
    %v396 = vshrl.u32 %v395, 7
    %v397 = vsub.s32 0, %v396
    %v398 = vrot.slane %v393, %v397
    %v416 = vunpack.c.l.b16 %v377
    %v417 = vunpack.c.l.b16 %v378
    %v418 = vunpack.c.l.b16 %v379
    %v419 = vunpack.c.l.b16 %v380
    %v420 = vunpack.c.l.b16 %v381
    %v421 = vunpack.c.l.b16 %v382
    %v422 = vunpack.c.l.b16 %v383
    %v423 = vunpack.c.l.b16 %v384
    %v424 = vunpack.c.l.b16 %v385
    %v425 = vunpack.c.l.b16 %v386
    %v426 = vunpack.c.l.b16 %v387
    %v427 = vunpack.c.l.b16 %v388
    %v428 = vunpack.c.l.b16 %v389
    %v429 = vunpack.c.l.b16 %v390
    %v430 = vunpack.c.l.b16 %v391
    %v431 = vunpack.c.l.b16 %v392
    %v432 = vpack.c.b16 %v417, %v416
    %v433 = vpack.c.b16 %v419, %v418
    %v434 = vpack.c.b16 %v421, %v420
    %v435 = vpack.c.b16 %v423, %v422
    %v436 = vpack.c.b16 %v425, %v424
    %v437 = vpack.c.b16 %v427, %v426
    %v438 = vpack.c.b16 %v429, %v428
    %v439 = vpack.c.b16 %v431, %v430
    %448 = vmatprep.subr.bf16.mxu0 0
    %449 = vmatpush1.bf16.msra.mxu0 %v432
    %450 = vmatprep.subr.bf16.mxu0 0
    %451 = vmatpush1.bf16.msra.mxu0 %v433
    %452 = vmatprep.subr.bf16.mxu0 0
    %453 = vmatpush1.bf16.msra.mxu0 %v434
    %454 = vmatprep.subr.bf16.mxu0 0
    %455 = vmatpush1.bf16.msra.mxu0 %v435
    %456 = vmatprep.subr.bf16.mxu0 0
    %457 = vmatpush1.bf16.msra.mxu0 %v436
    %458 = vmatprep.subr.bf16.mxu0 0
    %459 = vmatpush1.bf16.msra.mxu0 %v437
    %460 = vmatprep.subr.bf16.mxu0 0
    %461 = vmatpush1.bf16.msra.mxu0 %v438
    %462 = vmatprep.subr.bf16.mxu0 0
    %463 = vmatpush1.bf16.msra.mxu0 %v439
    %464 = vmatprep.subr.bf16.mxu0 0
    %465 = vmatpush1.bf16.msra.mxu0 0
    %466 = vmatprep.subr.bf16.mxu0 0
    %467 = vmatpush1.bf16.msra.mxu0 0
    %468 = vmatprep.subr.bf16.mxu0 0
    %469 = vmatpush1.bf16.msra.mxu0 0
    %470 = vmatprep.subr.bf16.mxu0 0
    %471 = vmatpush1.bf16.msra.mxu0 0
    %472 = vmatprep.subr.bf16.mxu0 0
    %473 = vmatpush1.bf16.msra.mxu0 0
    %474 = vmatprep.subr.bf16.mxu0 0
    %475 = vmatpush1.bf16.msra.mxu0 0
    %476 = vmatprep.subr.bf16.mxu0 0
    %477 = vmatpush1.bf16.msra.mxu0 0
    %478 = vmatprep.subr.bf16.mxu0 0
    %479 = vmatpush1.bf16.msra.mxu0 0
    %480 = vmatprep.mubr.bf16.mxu0 0
    %481 = vmatmul.mubr.bf16.gmra.mrb[0].mxu0 %v376
    %v482 = vpop.f32.mrb[0].mxu0
    %v483 = vadd.f32 %v398, %v482
    %v484 = vpop.f32.mrb[0].mxu0
    %v485 = vpop.f32.mrb[0].mxu0
    %v486 = vpop.f32.mrb[0].mxu0
    %487 = vdwg.mxu0
    %v488 = vmax.f32 %v483, 0.0
    %v489 = vpack.c.bf16 %v488, %v488
    %v490 = vld [vmem:[#allocation10] sm:$0xf]
    %v491 = vld [vmem:[#allocation10 + $0x4] sm:$0xf]
    %v492 = vld [vmem:[#allocation10 + $0x8] sm:$0xf]
    %v493 = vld [vmem:[#allocation10 + $0xc] sm:$0xf]
    %v494 = vld [vmem:[#allocation10 + $0x10] sm:$0xf]
    %v495 = vld [vmem:[#allocation10 + $0x14] sm:$0xf]
    %v496 = vld [vmem:[#allocation10 + $0x18] sm:$0xf]
    %v497 = vld [vmem:[#allocation10 + $0x1c] sm:$0xf]
    %v498 = vld [vmem:[#allocation10 + $0x20] sm:$0xf]
    %v499 = vld [vmem:[#allocation10 + $0x24] sm:$0xf]
    %v500 = vld [vmem:[#allocation10 + $0x28] sm:$0xf]
    %v501 = vld [vmem:[#allocation10 + $0x2c] sm:$0xf]
    %v502 = vld [vmem:[#allocation10 + $0x30] sm:$0xf]
    %v503 = vld [vmem:[#allocation10 + $0x34] sm:$0xf]
    %v504 = vld [vmem:[#allocation10 + $0x38] sm:$0xf]
    %v505 = vld [vmem:[#allocation10 + $0x3c] sm:$0xf]
    %v506 = vld [vmem:[#allocation14 + $0x3] sm:$0x1]
    %v508 = vlaneseq
    %v509 = vshrl.u32 %v508, 7
    %v510 = vsub.s32 0, %v509
    %v511 = vrot.slane %v506, %v510
    %v529 = vunpack.c.l.b16 %v490
    %v530 = vunpack.c.l.b16 %v491
    %v531 = vunpack.c.l.b16 %v492
    %v532 = vunpack.c.l.b16 %v493
    %v533 = vunpack.c.l.b16 %v494
    %v534 = vunpack.c.l.b16 %v495
    %v535 = vunpack.c.l.b16 %v496
    %v536 = vunpack.c.l.b16 %v497
    %v537 = vunpack.c.l.b16 %v498
    %v538 = vunpack.c.l.b16 %v499
    %v539 = vunpack.c.l.b16 %v500
    %v540 = vunpack.c.l.b16 %v501
    %v541 = vunpack.c.l.b16 %v502
    %v542 = vunpack.c.l.b16 %v503
    %v543 = vunpack.c.l.b16 %v504
    %v544 = vunpack.c.l.b16 %v505
    %v545 = vpack.c.b16 %v530, %v529
    %v546 = vpack.c.b16 %v532, %v531
    %v547 = vpack.c.b16 %v534, %v533
    %v548 = vpack.c.b16 %v536, %v535
    %v549 = vpack.c.b16 %v538, %v537
    %v550 = vpack.c.b16 %v540, %v539
    %v551 = vpack.c.b16 %v542, %v541
    %v552 = vpack.c.b16 %v544, %v543
    %561 = vmatprep.subr.bf16.mxu0 0
    %562 = vmatpush1.bf16.msra.mxu0 %v545
    %563 = vmatprep.subr.bf16.mxu0 0
    %564 = vmatpush1.bf16.msra.mxu0 %v546
    %565 = vmatprep.subr.bf16.mxu0 0
    %566 = vmatpush1.bf16.msra.mxu0 %v547
    %567 = vmatprep.subr.bf16.mxu0 0
    %568 = vmatpush1.bf16.msra.mxu0 %v548
    %569 = vmatprep.subr.bf16.mxu0 0
    %570 = vmatpush1.bf16.msra.mxu0 %v549
    %571 = vmatprep.subr.bf16.mxu0 0
    %572 = vmatpush1.bf16.msra.mxu0 %v550
    %573 = vmatprep.subr.bf16.mxu0 0
    %574 = vmatpush1.bf16.msra.mxu0 %v551
    %575 = vmatprep.subr.bf16.mxu0 0
    %576 = vmatpush1.bf16.msra.mxu0 %v552
    %577 = vmatprep.subr.bf16.mxu0 0
    %578 = vmatpush1.bf16.msra.mxu0 0
    %579 = vmatprep.subr.bf16.mxu0 0
    %580 = vmatpush1.bf16.msra.mxu0 0
    %581 = vmatprep.subr.bf16.mxu0 0
    %582 = vmatpush1.bf16.msra.mxu0 0
    %583 = vmatprep.subr.bf16.mxu0 0
    %584 = vmatpush1.bf16.msra.mxu0 0
    %585 = vmatprep.subr.bf16.mxu0 0
    %586 = vmatpush1.bf16.msra.mxu0 0
    %587 = vmatprep.subr.bf16.mxu0 0
    %588 = vmatpush1.bf16.msra.mxu0 0
    %589 = vmatprep.subr.bf16.mxu0 0
    %590 = vmatpush1.bf16.msra.mxu0 0
    %591 = vmatprep.subr.bf16.mxu0 0
    %592 = vmatpush1.bf16.msra.mxu0 0
    %593 = vmatprep.mubr.bf16.mxu0 0
    %594 = vmatmul.mubr.bf16.gmra.mrb[0].mxu0 %v489
    %v595 = vpop.f32.mrb[0].mxu0
    %v596 = vadd.f32 %v511, %v595
    %v597 = vpop.f32.mrb[0].mxu0
    %v598 = vpop.f32.mrb[0].mxu0
    %v599 = vpop.f32.mrb[0].mxu0
    %600 = vdwg.mxu0
    %v601 = vmax.f32 %v596, 0.0
    %v602 = vpack.c.bf16 %v601, %v601
    %v603 = vld [vmem:[#allocation11] sm:$0xf]
    %v604 = vld [vmem:[#allocation11 + $0x4] sm:$0xf]
    %v605 = vld [vmem:[#allocation11 + $0x8] sm:$0xf]
    %v606 = vld [vmem:[#allocation11 + $0xc] sm:$0xf]
    %v607 = vld [vmem:[#allocation11 + $0x10] sm:$0xf]
    %v608 = vld [vmem:[#allocation11 + $0x14] sm:$0xf]
    %v609 = vld [vmem:[#allocation11 + $0x18] sm:$0xf]
    %v610 = vld [vmem:[#allocation11 + $0x1c] sm:$0xf]
    %v611 = vld [vmem:[#allocation11 + $0x20] sm:$0xf]
    %v612 = vld [vmem:[#allocation11 + $0x24] sm:$0xf]
    %v613 = vld [vmem:[#allocation11 + $0x28] sm:$0xf]
    %v614 = vld [vmem:[#allocation11 + $0x2c] sm:$0xf]
    %v615 = vld [vmem:[#allocation11 + $0x30] sm:$0xf]
    %v616 = vld [vmem:[#allocation11 + $0x34] sm:$0xf]
    %v617 = vld [vmem:[#allocation11 + $0x38] sm:$0xf]
    %v618 = vld [vmem:[#allocation11 + $0x3c] sm:$0xf]
    %v619 = vld [vmem:[#allocation14 + $0x4] sm:$0x1]
    %v621 = vlaneseq
    %v622 = vshrl.u32 %v621, 7
    %v623 = vsub.s32 0, %v622
    %v624 = vrot.slane %v619, %v623
    %v642 = vunpack.c.l.b16 %v603
    %v643 = vunpack.c.l.b16 %v604
    %v644 = vunpack.c.l.b16 %v605
    %v645 = vunpack.c.l.b16 %v606
    %v646 = vunpack.c.l.b16 %v607
    %v647 = vunpack.c.l.b16 %v608
    %v648 = vunpack.c.l.b16 %v609
    %v649 = vunpack.c.l.b16 %v610
    %v650 = vunpack.c.l.b16 %v611
    %v651 = vunpack.c.l.b16 %v612
    %v652 = vunpack.c.l.b16 %v613
    %v653 = vunpack.c.l.b16 %v614
    %v654 = vunpack.c.l.b16 %v615
    %v655 = vunpack.c.l.b16 %v616
    %v656 = vunpack.c.l.b16 %v617
    %v657 = vunpack.c.l.b16 %v618
    %v658 = vpack.c.b16 %v643, %v642
    %v659 = vpack.c.b16 %v645, %v644
    %v660 = vpack.c.b16 %v647, %v646
    %v661 = vpack.c.b16 %v649, %v648
    %v662 = vpack.c.b16 %v651, %v650
    %v663 = vpack.c.b16 %v653, %v652
    %v664 = vpack.c.b16 %v655, %v654
    %v665 = vpack.c.b16 %v657, %v656
    %674 = vmatprep.subr.bf16.mxu0 0
    %675 = vmatpush1.bf16.msra.mxu0 %v658
    %676 = vmatprep.subr.bf16.mxu0 0
    %677 = vmatpush1.bf16.msra.mxu0 %v659
    %678 = vmatprep.subr.bf16.mxu0 0
    %679 = vmatpush1.bf16.msra.mxu0 %v660
    %680 = vmatprep.subr.bf16.mxu0 0
    %681 = vmatpush1.bf16.msra.mxu0 %v661
    %682 = vmatprep.subr.bf16.mxu0 0
    %683 = vmatpush1.bf16.msra.mxu0 %v662
    %684 = vmatprep.subr.bf16.mxu0 0
    %685 = vmatpush1.bf16.msra.mxu0 %v663
    %686 = vmatprep.subr.bf16.mxu0 0
    %687 = vmatpush1.bf16.msra.mxu0 %v664
    %688 = vmatprep.subr.bf16.mxu0 0
    %689 = vmatpush1.bf16.msra.mxu0 %v665
    %690 = vmatprep.subr.bf16.mxu0 0
    %691 = vmatpush1.bf16.msra.mxu0 0
    %692 = vmatprep.subr.bf16.mxu0 0
    %693 = vmatpush1.bf16.msra.mxu0 0
    %694 = vmatprep.subr.bf16.mxu0 0
    %695 = vmatpush1.bf16.msra.mxu0 0
    %696 = vmatprep.subr.bf16.mxu0 0
    %697 = vmatpush1.bf16.msra.mxu0 0
    %698 = vmatprep.subr.bf16.mxu0 0
    %699 = vmatpush1.bf16.msra.mxu0 0
    %700 = vmatprep.subr.bf16.mxu0 0
    %701 = vmatpush1.bf16.msra.mxu0 0
    %702 = vmatprep.subr.bf16.mxu0 0
    %703 = vmatpush1.bf16.msra.mxu0 0
    %704 = vmatprep.subr.bf16.mxu0 0
    %705 = vmatpush1.bf16.msra.mxu0 0
    %706 = vmatprep.mubr.bf16.mxu0 0
    %707 = vmatmul.mubr.bf16.gmra.mrb[0].mxu0 %v602
    %v708 = vpop.f32.mrb[0].mxu0
    %v709 = vadd.f32 %v624, %v708
    %v710 = vpop.f32.mrb[0].mxu0
    %v711 = vpop.f32.mrb[0].mxu0
    %v712 = vpop.f32.mrb[0].mxu0
    %713 = vdwg.mxu0
    %v714 = vmax.f32 %v709, 0.0
    %v715 = vpack.c.bf16 %v714, %v714
    %v716 = vld [vmem:[#allocation13] sm:$0xf]
    %v717 = vld [vmem:[#allocation13 + $0x4] sm:$0xf]
    %v718 = vld [vmem:[#allocation13 + $0x8] sm:$0xf]
    %v719 = vld [vmem:[#allocation13 + $0xc] sm:$0xf]
    %v720 = vld [vmem:[#allocation13 + $0x10] sm:$0xf]
    %v721 = vld [vmem:[#allocation13 + $0x14] sm:$0xf]
    %v722 = vld [vmem:[#allocation13 + $0x18] sm:$0xf]
    %v723 = vld [vmem:[#allocation13 + $0x1c] sm:$0xf]
    %v724 = vld [vmem:[#allocation13 + $0x20] sm:$0xf]
    %v725 = vld [vmem:[#allocation13 + $0x24] sm:$0xf]
    %v726 = vld [vmem:[#allocation13 + $0x28] sm:$0xf]
    %v727 = vld [vmem:[#allocation13 + $0x2c] sm:$0xf]
    %v728 = vld [vmem:[#allocation13 + $0x30] sm:$0xf]
    %v729 = vld [vmem:[#allocation13 + $0x34] sm:$0xf]
    %v730 = vld [vmem:[#allocation13 + $0x38] sm:$0xf]
    %v731 = vld [vmem:[#allocation13 + $0x3c] sm:$0xf]
    %v732 = vld [vmem:[#allocation16] sm:$0x1]
    %v734 = vlaneseq
    %v735 = vshrl.u32 %v734, 7
    %v736 = vsub.s32 0, %v735
    %v737 = vrot.slane %v732, %v736
    %v755 = vunpack.c.l.b16 %v716
    %v756 = vunpack.c.l.b16 %v717
    %v757 = vunpack.c.l.b16 %v718
    %v758 = vunpack.c.l.b16 %v719
    %v759 = vunpack.c.l.b16 %v720
    %v760 = vunpack.c.l.b16 %v721
    %v761 = vunpack.c.l.b16 %v722
    %v762 = vunpack.c.l.b16 %v723
    %v763 = vunpack.c.l.b16 %v724
    %v764 = vunpack.c.l.b16 %v725
    %v765 = vunpack.c.l.b16 %v726
    %v766 = vunpack.c.l.b16 %v727
    %v767 = vunpack.c.l.b16 %v728
    %v768 = vunpack.c.l.b16 %v729
    %v769 = vunpack.c.l.b16 %v730
    %v770 = vunpack.c.l.b16 %v731
    %v771 = vpack.c.b16 %v756, %v755
    %v772 = vpack.c.b16 %v758, %v757
    %v773 = vpack.c.b16 %v760, %v759
    %v774 = vpack.c.b16 %v762, %v761
    %v775 = vpack.c.b16 %v764, %v763
    %v776 = vpack.c.b16 %v766, %v765
    %v777 = vpack.c.b16 %v768, %v767
    %v778 = vpack.c.b16 %v770, %v769
    %787 = vmatprep.subr.bf16.mxu0 0
    %788 = vmatpush1.bf16.msra.mxu0 %v771
    %789 = vmatprep.subr.bf16.mxu0 0
    %790 = vmatpush1.bf16.msra.mxu0 %v772
    %791 = vmatprep.subr.bf16.mxu0 0
    %792 = vmatpush1.bf16.msra.mxu0 %v773
    %793 = vmatprep.subr.bf16.mxu0 0
    %794 = vmatpush1.bf16.msra.mxu0 %v774
    %795 = vmatprep.subr.bf16.mxu0 0
    %796 = vmatpush1.bf16.msra.mxu0 %v775
    %797 = vmatprep.subr.bf16.mxu0 0
    %798 = vmatpush1.bf16.msra.mxu0 %v776
    %799 = vmatprep.subr.bf16.mxu0 0
    %800 = vmatpush1.bf16.msra.mxu0 %v777
    %801 = vmatprep.subr.bf16.mxu0 0
    %802 = vmatpush1.bf16.msra.mxu0 %v778
    %803 = vmatprep.subr.bf16.mxu0 0
    %804 = vmatpush1.bf16.msra.mxu0 0
    %805 = vmatprep.subr.bf16.mxu0 0
    %806 = vmatpush1.bf16.msra.mxu0 0
    %807 = vmatprep.subr.bf16.mxu0 0
    %808 = vmatpush1.bf16.msra.mxu0 0
    %809 = vmatprep.subr.bf16.mxu0 0
    %810 = vmatpush1.bf16.msra.mxu0 0
    %811 = vmatprep.subr.bf16.mxu0 0
    %812 = vmatpush1.bf16.msra.mxu0 0
    %813 = vmatprep.subr.bf16.mxu0 0
    %814 = vmatpush1.bf16.msra.mxu0 0
    %815 = vmatprep.subr.bf16.mxu0 0
    %816 = vmatpush1.bf16.msra.mxu0 0
    %817 = vmatprep.subr.bf16.mxu0 0
    %818 = vmatpush1.bf16.msra.mxu0 0
    %819 = vmatprep.mubr.bf16.mxu0 0
    %820 = vmatmul.mubr.bf16.gmra.mrb[0].mxu0 %v715
    %v821 = vpop.f32.mrb[0].mxu0
    %v822 = vadd.f32 %v737, %v821
    %v823 = vpop.f32.mrb[0].mxu0
    %v824 = vpop.f32.mrb[0].mxu0
    %v825 = vpop.f32.mrb[0].mxu0
    %826 = vdwg.mxu0
    %827 = vst [vmem:[#allocation17] sm:$0xff] %v822
    // Predicated region
    $region74: #{tpu_custom_call.1} parent=1 // pred_check
      _
    $region75: #{tpu_custom_call.1} parent=1 // pred_check_branch
      %829 = sbr.rel (0) target = $region77
    $region76: #{tpu_custom_call.1} parent=1 // pred_region
      %s831 = ssub.s32 128, 128
      %832 = vsyncadd [#allocation4], %s831
      %s834 = sshll.u32 [#allocation17], 4
      %s835 = int_to_ptr.vmem [resolvable:$true] %s834
      %837 = dma.vmem_to_hbm [thread:$0]  %s835, 128, %s9, [#allocation4]
    $region77: #{tpu_custom_call.1} parent=1 // pred_fallthru
      _
    // Predicated region
    $region78: #{tpu_custom_call.1} parent=1 // pred_check
      _
    $region79: #{tpu_custom_call.1} parent=1 // pred_check_branch
      %839 = sbr.rel (0) target = $region81
    $region80: #{tpu_custom_call.1} parent=1 // pred_region
      %840 = dma.done [#allocation4], 128
    $region81: #{tpu_custom_call.1} parent=1 // pred_fallthru
      _
    %841 = vsyncpa [#allocation3], 1
    %842 = vsyncpa [#allocation6], 1
    %843 = vsyncpa [#allocation9], 1
    %844 = vsyncpa [#allocation12], 1
    %845 = vsyncpa [#allocation15], 1
    %846 = vsyncpa [#allocation4], 1

</llo_original>
